<compile_context>
chip_gen: v6e
topology: v6e:2x2x1
jax: 0.10.0
libtpu: 0.0.40
codegen_flags: <defaults>
</compile_context>

<pallas_src>
import functools
import math

import jax
import jax.numpy as jnp
from jax.experimental import pallas as pl
from jax.experimental.pallas import tpu as pltpu


LN_EPS = 1e-5          # torch.nn.LayerNorm default eps (Python float -> inlined literal)
INV_SQRT2 = 0.7071067811865476
LANE = 128             # classifier output padded to a multiple of the lane width


def _make_fused_mlp_kernel(num_layers, approx_gelu):
    """Whole CategoryHead forward in one kernel body (layer loop unrolled at trace time).

    Ref order: x, (w_bf16, packed_vec[3, d]) * num_layers, w_cls_bf16, b_cls, out.
    packed_vec rows are (bias, gamma, beta).
    """

    def kernel(*refs):
        x_ref, o_ref = refs[0], refs[-1]
        p = refs[1:-1]

        def mm(lhs_f32, w_ref):
            # bf16 MXU operands, f32 accumulation.
            return jnp.dot(lhs_f32.astype(jnp.bfloat16), w_ref[...],
                           preferred_element_type=jnp.float32)

        h = x_ref[...].astype(jnp.float32)
        for l in range(num_layers):
            w_ref, vec_ref = p[2 * l], p[2 * l + 1]
            vec = vec_ref[...]                    # (3, d) f32: bias / gamma / beta
            b, g, be = vec[0:1, :], vec[1:2, :], vec[2:3, :]
            # Linear
            h = mm(h, w_ref) + b
            # LayerNorm over the feature dim (f32 math: v5e-safe VPU path)
            mean = jnp.mean(h, axis=-1, keepdims=True)
            c = h - mean
            var = jnp.mean(c * c, axis=-1, keepdims=True)
            hn = c * jax.lax.rsqrt(var + LN_EPS)
            hn = hn * g + be
            if approx_gelu:
                # tanh-approx GELU: transcendental goes to the (otherwise idle) EUP slot.
                h = jax.nn.gelu(hn, approximate=True)
            else:
                # exact GELU (matches torch.nn.GELU(approximate='none'))
                h = 0.5 * hn * (1.0 + jax.lax.erf(hn * INV_SQRT2))
            # TODO(synk): nn.Dropout(p=0.3) is identity in eval/inference mode; not applied.
        w_cls_ref, b_cls_ref = p[2 * num_layers], p[2 * num_layers + 1]
        o_ref[...] = (mm(h, w_cls_ref) + b_cls_ref[...]).astype(o_ref.dtype)

    return kernel


def pack_params(layer_params, cls_params):
    """One-time (outside the hot path) param packing:
    Linear weights -> bf16; (bias, gamma, beta) -> one (3, d) f32 array per layer;
    classifier weight/bias lane-padded to 128 columns."""
    packed_layers = []
    for (w, b, g, be) in layer_params:
        packed_layers.append((
            w.astype(jnp.bfloat16),
            jnp.stack([b, g, be], axis=0).astype(jnp.float32),
        ))
    w_cls, b_cls = cls_params
    d_prev, num_classes = w_cls.shape
    n_pad = pl.cdiv(num_classes, LANE) * LANE
    w_cls_p = (jnp.zeros((d_prev, n_pad), jnp.bfloat16)
               .at[:, :num_classes].set(w_cls.astype(jnp.bfloat16)))
    b_cls_p = (jnp.zeros((1, n_pad), jnp.float32)
               .at[0, :num_classes].set(b_cls.astype(jnp.float32)))
    return tuple(packed_layers), (w_cls_p, b_cls_p), int(num_classes)


def _pick_batch_tile(B):
    """Batch tile in rows (multiple of 8). Small batches are split into >=2 grid
    steps so the 'parallel' axis shards across both v7x TensorCores; large batches
    use 256-row tiles to amortize per-step overhead (params are VMEM-resident)."""
    Bp8 = ((B + 7) // 8) * 8
    if Bp8 <= 8:
        return 8
    if Bp8 <= 512:
        return max(8, (Bp8 // 2 // 8) * 8)
    return 256


@functools.partial(jax.jit, static_argnames=("num_classes", "approx_gelu"))
def category_head_forward(x, packed_layers, cls_packed, *, num_classes, approx_gelu=False):
    B, d_in = x.shape
    num_layers = len(packed_layers)
    w_cls_p, b_cls_p = cls_packed
    d_prev, n_pad = w_cls_p.shape

    tb = _pick_batch_tile(B)
    Bp = pl.cdiv(B, tb) * tb
    x_p = x if Bp == B else jnp.pad(x, ((0, Bp - B), (0, 0)))
    # NOTE: zero-padded rows flow through LayerNorm (h = bias, var > 0 generically,
    # eps > 0 regardless) so they stay finite; they are sliced off below.

    # x tiles over the batch grid; every parameter uses a constant index_map so it
    # is DMA'd into VMEM once and stays resident across grid steps.
    flat = [x_p]
    in_specs = [pl.BlockSpec((tb, d_in), lambda i: (i, 0))]
    for (w, vec) in packed_layers:
        flat += [w, vec]
        in_specs += [pl.BlockSpec(w.shape, lambda i: (0, 0)),
                     pl.BlockSpec(vec.shape, lambda i: (0, 0))]
    flat += [w_cls_p, b_cls_p]
    in_specs += [pl.BlockSpec(w_cls_p.shape, lambda i: (0, 0)),
                 pl.BlockSpec(b_cls_p.shape, lambda i: (0, 0))]

    # Advisory cost estimate for XLA scheduling around the custom call.
    dims = [d_in] + [int(w.shape[1]) for (w, _) in packed_layers]
    flops = sum(2 * Bp * a * b for a, b in zip(dims[:-1], dims[1:]))
    flops += 2 * Bp * dims[-1] * n_pad
    transcendentals = Bp * sum(dims[1:])
    param_bytes = sum(int(p.size) * p.dtype.itemsize for p in flat[1:])
    bytes_accessed = int(x_p.size) * 4 + param_bytes + Bp * n_pad * 4

    out = pl.pallas_call(
        _make_fused_mlp_kernel(num_layers, approx_gelu),
        out_shape=jax.ShapeDtypeStruct((Bp, n_pad), jnp.float32),
        grid_spec=pl.GridSpec(
            grid=(Bp // tb,),
            in_specs=in_specs,
            out_specs=pl.BlockSpec((tb, n_pad), lambda i: (i, 0)),
        ),
        compiler_params=pltpu.CompilerParams(
            dimension_semantics=("parallel",)),   # batch axis shards across v7x TCs
        cost_estimate=pl.CostEstimate(
            flops=int(flops),
            transcendentals=int(transcendentals),
            bytes_accessed=int(bytes_accessed)),
    )(*flat)

    return out[:B, :num_classes]


def init_params(key, input_dim=256, hidden_dims=(512, 256, 128, 64, 32), num_classes=7):
    """Deterministic synthetic parameters (shapes match the PyTorch module;
    weights stored as [d_in, d_out] = PyTorch weight.T)."""
    params = []
    prev = input_dim
    for h in hidden_dims:
        key, kw, kb = jax.random.split(key, 3)
        bound = 1.0 / math.sqrt(prev)
        w = jax.random.uniform(kw, (prev, h), jnp.float32, -bound, bound)
        b = jax.random.uniform(kb, (h,), jnp.float32, -bound, bound)
        gamma = jnp.ones((h,), jnp.float32)
        beta = jnp.zeros((h,), jnp.float32)
        params.append((w, b, gamma, beta))
        prev = h
    key, kw, kb = jax.random.split(key, 3)
    bound = 1.0 / math.sqrt(prev)
    w_cls = jax.random.uniform(kw, (prev, num_classes), jnp.float32, -bound, bound)
    b_cls = jax.random.uniform(kb, (num_classes,), jnp.float32, -bound, bound)
    return params, (w_cls, b_cls)


def _reference(x, layer_params, cls_params):
    """Pure-JAX f32 reference for correctness checking."""
    for (w, b, gamma, beta) in layer_params:
        h = x @ w + b
        mean = jnp.mean(h, axis=-1, keepdims=True)
        var = jnp.mean((h - mean) ** 2, axis=-1, keepdims=True)
        hn = (h - mean) / jnp.sqrt(var + LN_EPS)
        hn = hn * gamma + beta
        x = jax.nn.gelu(hn, approximate=False)
    w_cls, b_cls = cls_params
    return x @ w_cls + b_cls


if __name__ == "__main__":
    key = jax.random.PRNGKey(0)
    key, kx = jax.random.split(key)

    B, input_dim = 8, 256
    hidden_dims = (512, 256, 128, 64, 32)
    num_classes = 7

    x = jax.random.normal(kx, (B, input_dim), jnp.float32)
    layer_params, cls_params = init_params(
        key, input_dim=input_dim, hidden_dims=hidden_dims, num_classes=num_classes)

    # One-time packing (bf16 weights, padded classifier, stacked LN/bias vectors).
    packed_layers, cls_packed, nc = pack_params(layer_params, cls_params)

    ref = _reference(x, layer_params, cls_params)
    out = jax.block_until_ready(
        category_head_forward(x, packed_layers, cls_packed, num_classes=nc))
    assert out.shape == (B, num_classes), out.shape
    # bf16 MXU operands by default; LayerNorm renormalizes so error stays small,
    # but tolerance is loose vs. the pure-f32 reference.
    assert jnp.allclose(out, ref, atol=1e-1, rtol=1e-1), \
        float(jnp.max(jnp.abs(out - ref)))

    # Ragged batch exercises the cdiv + zero-pad path and a multi-step grid.
    x13 = jax.random.normal(jax.random.PRNGKey(1), (13, input_dim), jnp.float32)
    ref13 = _reference(x13, layer_params, cls_params)
    out13 = jax.block_until_ready(
        category_head_forward(x13, packed_layers, cls_packed, num_classes=nc))
    assert out13.shape == (13, num_classes), out13.shape
    assert jnp.allclose(out13, ref13, atol=1e-1, rtol=1e-1), \
        float(jnp.max(jnp.abs(out13 - ref13)))

    # Optional tanh-approx GELU path (EUP offload); looser tolerance vs exact-erf ref.
    out_tanh = jax.block_until_ready(
        category_head_forward(x, packed_layers, cls_packed, num_classes=nc,
                              approx_gelu=True))
    assert jnp.allclose(out_tanh, ref, atol=2e-1, rtol=2e-1), \
        float(jnp.max(jnp.abs(out_tanh - ref)))

    print("KERNEL_OK")
</pallas_src>

<mosaic_0001>
module attributes {stable_mosaic.version = 11 : i64} {
  func.func @kernel(%arg0: i32, %arg1: memref<8x256xf32, #tpu.memory_space<vmem>>, %arg2: memref<256x512xbf16, #tpu.memory_space<vmem>>, %arg3: memref<3x512xf32, #tpu.memory_space<vmem>>, %arg4: memref<512x256xbf16, #tpu.memory_space<vmem>>, %arg5: memref<3x256xf32, #tpu.memory_space<vmem>>, %arg6: memref<256x128xbf16, #tpu.memory_space<vmem>>, %arg7: memref<3x128xf32, #tpu.memory_space<vmem>>, %arg8: memref<128x64xbf16, #tpu.memory_space<vmem>>, %arg9: memref<3x64xf32, #tpu.memory_space<vmem>>, %arg10: memref<64x32xbf16, #tpu.memory_space<vmem>>, %arg11: memref<3x32xf32, #tpu.memory_space<vmem>>, %arg12: memref<32x128xbf16, #tpu.memory_space<vmem>>, %arg13: memref<1x128xf32, #tpu.memory_space<vmem>>, %arg14: memref<8x128xf32, #tpu.memory_space<vmem>>) attributes {dimension_semantics = [#tpu.dimension_semantics<parallel>], iteration_bounds = array<i64: 1>, scalar_prefetch = 0 : i64, scratch_operands = 0 : i64, tpu.core_type = #tpu.core_type<tc>, window_params = [{transform_indices = @transform_0, window_bounds = array<i64: 8, 256>}, {pipeline_mode = #tpu.pipeline_mode<synchronous>, transform_indices = @transform_1, window_bounds = array<i64: 256, 512>}, {pipeline_mode = #tpu.pipeline_mode<synchronous>, transform_indices = @transform_2, window_bounds = array<i64: 3, 512>}, {pipeline_mode = #tpu.pipeline_mode<synchronous>, transform_indices = @transform_3, window_bounds = array<i64: 512, 256>}, {pipeline_mode = #tpu.pipeline_mode<synchronous>, transform_indices = @transform_4, window_bounds = array<i64: 3, 256>}, {pipeline_mode = #tpu.pipeline_mode<synchronous>, transform_indices = @transform_5, window_bounds = array<i64: 256, 128>}, {pipeline_mode = #tpu.pipeline_mode<synchronous>, transform_indices = @transform_6, window_bounds = array<i64: 3, 128>}, {pipeline_mode = #tpu.pipeline_mode<synchronous>, transform_indices = @transform_7, window_bounds = array<i64: 128, 64>}, {pipeline_mode = #tpu.pipeline_mode<synchronous>, transform_indices = @transform_8, window_bounds = array<i64: 3, 64>}, {pipeline_mode = #tpu.pipeline_mode<synchronous>, transform_indices = @transform_9, window_bounds = array<i64: 64, 32>}, {pipeline_mode = #tpu.pipeline_mode<synchronous>, transform_indices = @transform_10, window_bounds = array<i64: 3, 32>}, {pipeline_mode = #tpu.pipeline_mode<synchronous>, transform_indices = @transform_11, window_bounds = array<i64: 32, 128>}, {pipeline_mode = #tpu.pipeline_mode<synchronous>, transform_indices = @transform_12, window_bounds = array<i64: 1, 128>}, {transform_indices = @transform_13, window_bounds = array<i64: 8, 128>}]} {
    %c0 = arith.constant 0 : index
    %c0_0 = arith.constant 0 : index
    %0 = vector.load %arg1[%c0, %c0_0] : memref<8x256xf32, #tpu.memory_space<vmem>>, vector<8x256xf32>
    %c0_1 = arith.constant 0 : index
    %c0_2 = arith.constant 0 : index
    %1 = vector.load %arg3[%c0_1, %c0_2] : memref<3x512xf32, #tpu.memory_space<vmem>>, vector<3x512xf32>
    %2 = vector.extract_strided_slice %1 {offsets = [0, 0], sizes = [1, 512], strides = [1, 1]} : vector<3x512xf32> to vector<1x512xf32>
    %3 = vector.extract_strided_slice %1 {offsets = [1, 0], sizes = [1, 512], strides = [1, 1]} : vector<3x512xf32> to vector<1x512xf32>
    %4 = vector.extract_strided_slice %1 {offsets = [2, 0], sizes = [1, 512], strides = [1, 1]} : vector<3x512xf32> to vector<1x512xf32>
    %5 = arith.truncf %0 : vector<8x256xf32> to vector<8x256xbf16>
    %c0_3 = arith.constant 0 : index
    %c0_4 = arith.constant 0 : index
    %6 = vector.load %arg2[%c0_3, %c0_4] : memref<256x512xbf16, #tpu.memory_space<vmem>>, vector<256x512xbf16>
    %cst = arith.constant dense<0.000000e+00> : vector<8x512xf32>
    %7 = tpu.matmul %5, %6, %cst {dimension_numbers = #tpu.dot_dimension_numbers<[1], [0], [0], [1], [0, 0, 1, 1], [], []>} : vector<8x256xbf16>, vector<256x512xbf16>, vector<8x512xf32> -> vector<8x512xf32>
    %8 = vector.broadcast %2 : vector<1x512xf32> to vector<8x512xf32>
    %9 = arith.addf %7, %8 : vector<8x512xf32>
    %cst_5 = arith.constant dense<0.000000e+00> : vector<8xf32>
    %10 = vector.multi_reduction <add>, %9, %cst_5 [1] : vector<8x512xf32> to vector<8xf32>
    %11 = vector.shape_cast %10 : vector<8xf32> to vector<8x1xf32>
    %cst_6 = arith.constant 5.120000e+02 : f32
    %12 = vector.broadcast %cst_6 : f32 to vector<8x1xf32>
    %13 = arith.divf %11, %12 : vector<8x1xf32>
    %14 = vector.broadcast %13 : vector<8x1xf32> to vector<8x512xf32>
    %15 = arith.subf %9, %14 : vector<8x512xf32>
    %16 = arith.mulf %15, %15 : vector<8x512xf32>
    %cst_7 = arith.constant dense<0.000000e+00> : vector<8xf32>
    %17 = vector.multi_reduction <add>, %16, %cst_7 [1] : vector<8x512xf32> to vector<8xf32>
    %18 = vector.shape_cast %17 : vector<8xf32> to vector<8x1xf32>
    %cst_8 = arith.constant 5.120000e+02 : f32
    %19 = vector.broadcast %cst_8 : f32 to vector<8x1xf32>
    %20 = arith.divf %18, %19 : vector<8x1xf32>
    %cst_9 = arith.constant 9.99999974E-6 : f32
    %21 = vector.broadcast %cst_9 : f32 to vector<8x1xf32>
    %22 = arith.addf %20, %21 : vector<8x1xf32>
    %23 = math.rsqrt %22 : vector<8x1xf32>
    %24 = vector.broadcast %23 : vector<8x1xf32> to vector<8x512xf32>
    %25 = arith.mulf %15, %24 : vector<8x512xf32>
    %26 = vector.broadcast %3 : vector<1x512xf32> to vector<8x512xf32>
    %27 = arith.mulf %25, %26 : vector<8x512xf32>
    %28 = vector.broadcast %4 : vector<1x512xf32> to vector<8x512xf32>
    %29 = arith.addf %27, %28 : vector<8x512xf32>
    %cst_10 = arith.constant 5.000000e-01 : f32
    %30 = vector.broadcast %cst_10 : f32 to vector<8x512xf32>
    %31 = arith.mulf %30, %29 : vector<8x512xf32>
    %cst_11 = arith.constant 0.707106769 : f32
    %32 = vector.broadcast %cst_11 : f32 to vector<8x512xf32>
    %33 = arith.mulf %29, %32 : vector<8x512xf32>
    %34 = math.erf %33 : vector<8x512xf32>
    %cst_12 = arith.constant 1.000000e+00 : f32
    %35 = vector.broadcast %cst_12 : f32 to vector<8x512xf32>
    %36 = arith.addf %35, %34 : vector<8x512xf32>
    %37 = arith.mulf %31, %36 : vector<8x512xf32>
    %c0_13 = arith.constant 0 : index
    %c0_14 = arith.constant 0 : index
    %38 = vector.load %arg5[%c0_13, %c0_14] : memref<3x256xf32, #tpu.memory_space<vmem>>, vector<3x256xf32>
    %39 = vector.extract_strided_slice %38 {offsets = [0, 0], sizes = [1, 256], strides = [1, 1]} : vector<3x256xf32> to vector<1x256xf32>
    %40 = vector.extract_strided_slice %38 {offsets = [1, 0], sizes = [1, 256], strides = [1, 1]} : vector<3x256xf32> to vector<1x256xf32>
    %41 = vector.extract_strided_slice %38 {offsets = [2, 0], sizes = [1, 256], strides = [1, 1]} : vector<3x256xf32> to vector<1x256xf32>
    %42 = arith.truncf %37 : vector<8x512xf32> to vector<8x512xbf16>
    %c0_15 = arith.constant 0 : index
    %c0_16 = arith.constant 0 : index
    %43 = vector.load %arg4[%c0_15, %c0_16] : memref<512x256xbf16, #tpu.memory_space<vmem>>, vector<512x256xbf16>
    %cst_17 = arith.constant dense<0.000000e+00> : vector<8x256xf32>
    %44 = tpu.matmul %42, %43, %cst_17 {dimension_numbers = #tpu.dot_dimension_numbers<[1], [0], [0], [1], [0, 0, 1, 1], [], []>} : vector<8x512xbf16>, vector<512x256xbf16>, vector<8x256xf32> -> vector<8x256xf32>
    %45 = vector.broadcast %39 : vector<1x256xf32> to vector<8x256xf32>
    %46 = arith.addf %44, %45 : vector<8x256xf32>
    %cst_18 = arith.constant dense<0.000000e+00> : vector<8xf32>
    %47 = vector.multi_reduction <add>, %46, %cst_18 [1] : vector<8x256xf32> to vector<8xf32>
    %48 = vector.shape_cast %47 : vector<8xf32> to vector<8x1xf32>
    %cst_19 = arith.constant 2.560000e+02 : f32
    %49 = vector.broadcast %cst_19 : f32 to vector<8x1xf32>
    %50 = arith.divf %48, %49 : vector<8x1xf32>
    %51 = vector.broadcast %50 : vector<8x1xf32> to vector<8x256xf32>
    %52 = arith.subf %46, %51 : vector<8x256xf32>
    %53 = arith.mulf %52, %52 : vector<8x256xf32>
    %cst_20 = arith.constant dense<0.000000e+00> : vector<8xf32>
    %54 = vector.multi_reduction <add>, %53, %cst_20 [1] : vector<8x256xf32> to vector<8xf32>
    %55 = vector.shape_cast %54 : vector<8xf32> to vector<8x1xf32>
    %cst_21 = arith.constant 2.560000e+02 : f32
    %56 = vector.broadcast %cst_21 : f32 to vector<8x1xf32>
    %57 = arith.divf %55, %56 : vector<8x1xf32>
    %cst_22 = arith.constant 9.99999974E-6 : f32
    %58 = vector.broadcast %cst_22 : f32 to vector<8x1xf32>
    %59 = arith.addf %57, %58 : vector<8x1xf32>
    %60 = math.rsqrt %59 : vector<8x1xf32>
    %61 = vector.broadcast %60 : vector<8x1xf32> to vector<8x256xf32>
    %62 = arith.mulf %52, %61 : vector<8x256xf32>
    %63 = vector.broadcast %40 : vector<1x256xf32> to vector<8x256xf32>
    %64 = arith.mulf %62, %63 : vector<8x256xf32>
    %65 = vector.broadcast %41 : vector<1x256xf32> to vector<8x256xf32>
    %66 = arith.addf %64, %65 : vector<8x256xf32>
    %cst_23 = arith.constant 5.000000e-01 : f32
    %67 = vector.broadcast %cst_23 : f32 to vector<8x256xf32>
    %68 = arith.mulf %67, %66 : vector<8x256xf32>
    %cst_24 = arith.constant 0.707106769 : f32
    %69 = vector.broadcast %cst_24 : f32 to vector<8x256xf32>
    %70 = arith.mulf %66, %69 : vector<8x256xf32>
    %71 = math.erf %70 : vector<8x256xf32>
    %cst_25 = arith.constant 1.000000e+00 : f32
    %72 = vector.broadcast %cst_25 : f32 to vector<8x256xf32>
    %73 = arith.addf %72, %71 : vector<8x256xf32>
    %74 = arith.mulf %68, %73 : vector<8x256xf32>
    %c0_26 = arith.constant 0 : index
    %c0_27 = arith.constant 0 : index
    %75 = vector.load %arg7[%c0_26, %c0_27] : memref<3x128xf32, #tpu.memory_space<vmem>>, vector<3x128xf32>
    %76 = vector.extract_strided_slice %75 {offsets = [0, 0], sizes = [1, 128], strides = [1, 1]} : vector<3x128xf32> to vector<1x128xf32>
    %77 = vector.extract_strided_slice %75 {offsets = [1, 0], sizes = [1, 128], strides = [1, 1]} : vector<3x128xf32> to vector<1x128xf32>
    %78 = vector.extract_strided_slice %75 {offsets = [2, 0], sizes = [1, 128], strides = [1, 1]} : vector<3x128xf32> to vector<1x128xf32>
    %79 = arith.truncf %74 : vector<8x256xf32> to vector<8x256xbf16>
    %c0_28 = arith.constant 0 : index
    %c0_29 = arith.constant 0 : index
    %80 = vector.load %arg6[%c0_28, %c0_29] : memref<256x128xbf16, #tpu.memory_space<vmem>>, vector<256x128xbf16>
    %cst_30 = arith.constant dense<0.000000e+00> : vector<8x128xf32>
    %81 = tpu.matmul %79, %80, %cst_30 {dimension_numbers = #tpu.dot_dimension_numbers<[1], [0], [0], [1], [0, 0, 1, 1], [], []>} : vector<8x256xbf16>, vector<256x128xbf16>, vector<8x128xf32> -> vector<8x128xf32>
    %82 = vector.broadcast %76 : vector<1x128xf32> to vector<8x128xf32>
    %83 = arith.addf %81, %82 : vector<8x128xf32>
    %cst_31 = arith.constant dense<0.000000e+00> : vector<8xf32>
    %84 = vector.multi_reduction <add>, %83, %cst_31 [1] : vector<8x128xf32> to vector<8xf32>
    %85 = vector.shape_cast %84 : vector<8xf32> to vector<8x1xf32>
    %cst_32 = arith.constant 1.280000e+02 : f32
    %86 = vector.broadcast %cst_32 : f32 to vector<8x1xf32>
    %87 = arith.divf %85, %86 : vector<8x1xf32>
    %88 = vector.broadcast %87 : vector<8x1xf32> to vector<8x128xf32>
    %89 = arith.subf %83, %88 : vector<8x128xf32>
    %90 = arith.mulf %89, %89 : vector<8x128xf32>
    %cst_33 = arith.constant dense<0.000000e+00> : vector<8xf32>
    %91 = vector.multi_reduction <add>, %90, %cst_33 [1] : vector<8x128xf32> to vector<8xf32>
    %92 = vector.shape_cast %91 : vector<8xf32> to vector<8x1xf32>
    %cst_34 = arith.constant 1.280000e+02 : f32
    %93 = vector.broadcast %cst_34 : f32 to vector<8x1xf32>
    %94 = arith.divf %92, %93 : vector<8x1xf32>
    %cst_35 = arith.constant 9.99999974E-6 : f32
    %95 = vector.broadcast %cst_35 : f32 to vector<8x1xf32>
    %96 = arith.addf %94, %95 : vector<8x1xf32>
    %97 = math.rsqrt %96 : vector<8x1xf32>
    %98 = vector.broadcast %97 : vector<8x1xf32> to vector<8x128xf32>
    %99 = arith.mulf %89, %98 : vector<8x128xf32>
    %100 = vector.broadcast %77 : vector<1x128xf32> to vector<8x128xf32>
    %101 = arith.mulf %99, %100 : vector<8x128xf32>
    %102 = vector.broadcast %78 : vector<1x128xf32> to vector<8x128xf32>
    %103 = arith.addf %101, %102 : vector<8x128xf32>
    %cst_36 = arith.constant 5.000000e-01 : f32
    %104 = vector.broadcast %cst_36 : f32 to vector<8x128xf32>
    %105 = arith.mulf %104, %103 : vector<8x128xf32>
    %cst_37 = arith.constant 0.707106769 : f32
    %106 = vector.broadcast %cst_37 : f32 to vector<8x128xf32>
    %107 = arith.mulf %103, %106 : vector<8x128xf32>
    %108 = math.erf %107 : vector<8x128xf32>
    %cst_38 = arith.constant 1.000000e+00 : f32
    %109 = vector.broadcast %cst_38 : f32 to vector<8x128xf32>
    %110 = arith.addf %109, %108 : vector<8x128xf32>
    %111 = arith.mulf %105, %110 : vector<8x128xf32>
    %c0_39 = arith.constant 0 : index
    %c0_40 = arith.constant 0 : index
    %112 = vector.load %arg9[%c0_39, %c0_40] : memref<3x64xf32, #tpu.memory_space<vmem>>, vector<3x64xf32>
    %113 = vector.extract_strided_slice %112 {offsets = [0, 0], sizes = [1, 64], strides = [1, 1]} : vector<3x64xf32> to vector<1x64xf32>
    %114 = vector.extract_strided_slice %112 {offsets = [1, 0], sizes = [1, 64], strides = [1, 1]} : vector<3x64xf32> to vector<1x64xf32>
    %115 = vector.extract_strided_slice %112 {offsets = [2, 0], sizes = [1, 64], strides = [1, 1]} : vector<3x64xf32> to vector<1x64xf32>
    %116 = arith.truncf %111 : vector<8x128xf32> to vector<8x128xbf16>
    %c0_41 = arith.constant 0 : index
    %c0_42 = arith.constant 0 : index
    %117 = vector.load %arg8[%c0_41, %c0_42] : memref<128x64xbf16, #tpu.memory_space<vmem>>, vector<128x64xbf16>
    %cst_43 = arith.constant dense<0.000000e+00> : vector<8x64xf32>
    %118 = tpu.matmul %116, %117, %cst_43 {dimension_numbers = #tpu.dot_dimension_numbers<[1], [0], [0], [1], [0, 0, 1, 1], [], []>} : vector<8x128xbf16>, vector<128x64xbf16>, vector<8x64xf32> -> vector<8x64xf32>
    %119 = vector.broadcast %113 : vector<1x64xf32> to vector<8x64xf32>
    %120 = arith.addf %118, %119 : vector<8x64xf32>
    %cst_44 = arith.constant dense<0.000000e+00> : vector<8xf32>
    %121 = vector.multi_reduction <add>, %120, %cst_44 [1] : vector<8x64xf32> to vector<8xf32>
    %122 = vector.shape_cast %121 : vector<8xf32> to vector<8x1xf32>
    %cst_45 = arith.constant 6.400000e+01 : f32
    %123 = vector.broadcast %cst_45 : f32 to vector<8x1xf32>
    %124 = arith.divf %122, %123 : vector<8x1xf32>
    %125 = vector.broadcast %124 : vector<8x1xf32> to vector<8x64xf32>
    %126 = arith.subf %120, %125 : vector<8x64xf32>
    %127 = arith.mulf %126, %126 : vector<8x64xf32>
    %cst_46 = arith.constant dense<0.000000e+00> : vector<8xf32>
    %128 = vector.multi_reduction <add>, %127, %cst_46 [1] : vector<8x64xf32> to vector<8xf32>
    %129 = vector.shape_cast %128 : vector<8xf32> to vector<8x1xf32>
    %cst_47 = arith.constant 6.400000e+01 : f32
    %130 = vector.broadcast %cst_47 : f32 to vector<8x1xf32>
    %131 = arith.divf %129, %130 : vector<8x1xf32>
    %cst_48 = arith.constant 9.99999974E-6 : f32
    %132 = vector.broadcast %cst_48 : f32 to vector<8x1xf32>
    %133 = arith.addf %131, %132 : vector<8x1xf32>
    %134 = math.rsqrt %133 : vector<8x1xf32>
    %135 = vector.broadcast %134 : vector<8x1xf32> to vector<8x64xf32>
    %136 = arith.mulf %126, %135 : vector<8x64xf32>
    %137 = vector.broadcast %114 : vector<1x64xf32> to vector<8x64xf32>
    %138 = arith.mulf %136, %137 : vector<8x64xf32>
    %139 = vector.broadcast %115 : vector<1x64xf32> to vector<8x64xf32>
    %140 = arith.addf %138, %139 : vector<8x64xf32>
    %cst_49 = arith.constant 5.000000e-01 : f32
    %141 = vector.broadcast %cst_49 : f32 to vector<8x64xf32>
    %142 = arith.mulf %141, %140 : vector<8x64xf32>
    %cst_50 = arith.constant 0.707106769 : f32
    %143 = vector.broadcast %cst_50 : f32 to vector<8x64xf32>
    %144 = arith.mulf %140, %143 : vector<8x64xf32>
    %145 = math.erf %144 : vector<8x64xf32>
    %cst_51 = arith.constant 1.000000e+00 : f32
    %146 = vector.broadcast %cst_51 : f32 to vector<8x64xf32>
    %147 = arith.addf %146, %145 : vector<8x64xf32>
    %148 = arith.mulf %142, %147 : vector<8x64xf32>
    %c0_52 = arith.constant 0 : index
    %c0_53 = arith.constant 0 : index
    %149 = vector.load %arg11[%c0_52, %c0_53] : memref<3x32xf32, #tpu.memory_space<vmem>>, vector<3x32xf32>
    %150 = vector.extract_strided_slice %149 {offsets = [0, 0], sizes = [1, 32], strides = [1, 1]} : vector<3x32xf32> to vector<1x32xf32>
    %151 = vector.extract_strided_slice %149 {offsets = [1, 0], sizes = [1, 32], strides = [1, 1]} : vector<3x32xf32> to vector<1x32xf32>
    %152 = vector.extract_strided_slice %149 {offsets = [2, 0], sizes = [1, 32], strides = [1, 1]} : vector<3x32xf32> to vector<1x32xf32>
    %153 = arith.truncf %148 : vector<8x64xf32> to vector<8x64xbf16>
    %c0_54 = arith.constant 0 : index
    %c0_55 = arith.constant 0 : index
    %154 = vector.load %arg10[%c0_54, %c0_55] : memref<64x32xbf16, #tpu.memory_space<vmem>>, vector<64x32xbf16>
    %cst_56 = arith.constant dense<0.000000e+00> : vector<8x32xf32>
    %155 = tpu.matmul %153, %154, %cst_56 {dimension_numbers = #tpu.dot_dimension_numbers<[1], [0], [0], [1], [0, 0, 1, 1], [], []>} : vector<8x64xbf16>, vector<64x32xbf16>, vector<8x32xf32> -> vector<8x32xf32>
    %156 = vector.broadcast %150 : vector<1x32xf32> to vector<8x32xf32>
    %157 = arith.addf %155, %156 : vector<8x32xf32>
    %cst_57 = arith.constant dense<0.000000e+00> : vector<8xf32>
    %158 = vector.multi_reduction <add>, %157, %cst_57 [1] : vector<8x32xf32> to vector<8xf32>
    %159 = vector.shape_cast %158 : vector<8xf32> to vector<8x1xf32>
    %cst_58 = arith.constant 3.200000e+01 : f32
    %160 = vector.broadcast %cst_58 : f32 to vector<8x1xf32>
    %161 = arith.divf %159, %160 : vector<8x1xf32>
    %162 = vector.broadcast %161 : vector<8x1xf32> to vector<8x32xf32>
    %163 = arith.subf %157, %162 : vector<8x32xf32>
    %164 = arith.mulf %163, %163 : vector<8x32xf32>
    %cst_59 = arith.constant dense<0.000000e+00> : vector<8xf32>
    %165 = vector.multi_reduction <add>, %164, %cst_59 [1] : vector<8x32xf32> to vector<8xf32>
    %166 = vector.shape_cast %165 : vector<8xf32> to vector<8x1xf32>
    %cst_60 = arith.constant 3.200000e+01 : f32
    %167 = vector.broadcast %cst_60 : f32 to vector<8x1xf32>
    %168 = arith.divf %166, %167 : vector<8x1xf32>
    %cst_61 = arith.constant 9.99999974E-6 : f32
    %169 = vector.broadcast %cst_61 : f32 to vector<8x1xf32>
    %170 = arith.addf %168, %169 : vector<8x1xf32>
    %171 = math.rsqrt %170 : vector<8x1xf32>
    %172 = vector.broadcast %171 : vector<8x1xf32> to vector<8x32xf32>
    %173 = arith.mulf %163, %172 : vector<8x32xf32>
    %174 = vector.broadcast %151 : vector<1x32xf32> to vector<8x32xf32>
    %175 = arith.mulf %173, %174 : vector<8x32xf32>
    %176 = vector.broadcast %152 : vector<1x32xf32> to vector<8x32xf32>
    %177 = arith.addf %175, %176 : vector<8x32xf32>
    %cst_62 = arith.constant 5.000000e-01 : f32
    %178 = vector.broadcast %cst_62 : f32 to vector<8x32xf32>
    %179 = arith.mulf %178, %177 : vector<8x32xf32>
    %cst_63 = arith.constant 0.707106769 : f32
    %180 = vector.broadcast %cst_63 : f32 to vector<8x32xf32>
    %181 = arith.mulf %177, %180 : vector<8x32xf32>
    %182 = math.erf %181 : vector<8x32xf32>
    %cst_64 = arith.constant 1.000000e+00 : f32
    %183 = vector.broadcast %cst_64 : f32 to vector<8x32xf32>
    %184 = arith.addf %183, %182 : vector<8x32xf32>
    %185 = arith.mulf %179, %184 : vector<8x32xf32>
    %186 = arith.truncf %185 : vector<8x32xf32> to vector<8x32xbf16>
    %c0_65 = arith.constant 0 : index
    %c0_66 = arith.constant 0 : index
    %187 = vector.load %arg12[%c0_65, %c0_66] : memref<32x128xbf16, #tpu.memory_space<vmem>>, vector<32x128xbf16>
    %cst_67 = arith.constant dense<0.000000e+00> : vector<8x128xf32>
    %188 = tpu.matmul %186, %187, %cst_67 {dimension_numbers = #tpu.dot_dimension_numbers<[1], [0], [0], [1], [0, 0, 1, 1], [], []>} : vector<8x32xbf16>, vector<32x128xbf16>, vector<8x128xf32> -> vector<8x128xf32>
    %c0_68 = arith.constant 0 : index
    %c0_69 = arith.constant 0 : index
    %189 = vector.load %arg13[%c0_68, %c0_69] : memref<1x128xf32, #tpu.memory_space<vmem>>, vector<1x128xf32>
    %190 = vector.broadcast %189 : vector<1x128xf32> to vector<8x128xf32>
    %191 = arith.addf %188, %190 : vector<8x128xf32>
    %c0_70 = arith.constant 0 : index
    %c0_71 = arith.constant 0 : index
    %192 = vector.load %arg14[%c0_70, %c0_71] : memref<8x128xf32, #tpu.memory_space<vmem>>, vector<8x128xf32>
    tpu.vector_store %arg14[%c0_70, %c0_71], %191 {strides = array<i32>} : memref<8x128xf32, #tpu.memory_space<vmem>>, vector<8x128xf32>,
    return
  }
  func.func @transform_0(%arg0: i32) -> (i32, i32) {
    %c0_i32 = arith.constant 0 : i32
    %c0_i32_0 = arith.constant 0 : i32
    return %arg0, %c0_i32 : i32, i32
  }
  func.func @transform_1(%arg0: i32) -> (i32, i32) {
    %c0_i32 = arith.constant 0 : i32
    %c0_i32_0 = arith.constant 0 : i32
    %c0_i32_1 = arith.constant 0 : i32
    return %c0_i32, %c0_i32_0 : i32, i32
  }
  func.func @transform_2(%arg0: i32) -> (i32, i32) {
    %c0_i32 = arith.constant 0 : i32
    %c0_i32_0 = arith.constant 0 : i32
    %c0_i32_1 = arith.constant 0 : i32
    return %c0_i32, %c0_i32_0 : i32, i32
  }
  func.func @transform_3(%arg0: i32) -> (i32, i32) {
    %c0_i32 = arith.constant 0 : i32
    %c0_i32_0 = arith.constant 0 : i32
    %c0_i32_1 = arith.constant 0 : i32
    return %c0_i32, %c0_i32_0 : i32, i32
  }
  func.func @transform_4(%arg0: i32) -> (i32, i32) {
    %c0_i32 = arith.constant 0 : i32
    %c0_i32_0 = arith.constant 0 : i32
    %c0_i32_1 = arith.constant 0 : i32
    return %c0_i32, %c0_i32_0 : i32, i32
  }
  func.func @transform_5(%arg0: i32) -> (i32, i32) {
    %c0_i32 = arith.constant 0 : i32
    %c0_i32_0 = arith.constant 0 : i32
    %c0_i32_1 = arith.constant 0 : i32
    return %c0_i32, %c0_i32_0 : i32, i32
  }
  func.func @transform_6(%arg0: i32) -> (i32, i32) {
    %c0_i32 = arith.constant 0 : i32
    %c0_i32_0 = arith.constant 0 : i32
    %c0_i32_1 = arith.constant 0 : i32
    return %c0_i32, %c0_i32_0 : i32, i32
  }
  func.func @transform_7(%arg0: i32) -> (i32, i32) {
    %c0_i32 = arith.constant 0 : i32
    %c0_i32_0 = arith.constant 0 : i32
    %c0_i32_1 = arith.constant 0 : i32
    return %c0_i32, %c0_i32_0 : i32, i32
  }
  func.func @transform_8(%arg0: i32) -> (i32, i32) {
    %c0_i32 = arith.constant 0 : i32
    %c0_i32_0 = arith.constant 0 : i32
    %c0_i32_1 = arith.constant 0 : i32
    return %c0_i32, %c0_i32_0 : i32, i32
  }
  func.func @transform_9(%arg0: i32) -> (i32, i32) {
    %c0_i32 = arith.constant 0 : i32
    %c0_i32_0 = arith.constant 0 : i32
    %c0_i32_1 = arith.constant 0 : i32
    return %c0_i32, %c0_i32_0 : i32, i32
  }
  func.func @transform_10(%arg0: i32) -> (i32, i32) {
    %c0_i32 = arith.constant 0 : i32
    %c0_i32_0 = arith.constant 0 : i32
    %c0_i32_1 = arith.constant 0 : i32
    return %c0_i32, %c0_i32_0 : i32, i32
  }
  func.func @transform_11(%arg0: i32) -> (i32, i32) {
    %c0_i32 = arith.constant 0 : i32
    %c0_i32_0 = arith.constant 0 : i32
    %c0_i32_1 = arith.constant 0 : i32
    return %c0_i32, %c0_i32_0 : i32, i32
  }
  func.func @transform_12(%arg0: i32) -> (i32, i32) {
    %c0_i32 = arith.constant 0 : i32
    %c0_i32_0 = arith.constant 0 : i32
    %c0_i32_1 = arith.constant 0 : i32
    return %c0_i32, %c0_i32_0 : i32, i32
  }
  func.func @transform_13(%arg0: i32) -> (i32, i32) {
    %c0_i32 = arith.constant 0 : i32
    %c0_i32_0 = arith.constant 0 : i32
    return %arg0, %c0_i32 : i32, i32
  }
}

</mosaic_0001>

<llo_original>
// kernel: category_head_forward.1
$region0: #{category_head_forward.1}
  #allocation0 [shape = 'u32[]', space=smem, size = 0x4, offset = 0x4, fixed_abs, tag = 'smem constant byte address 0x4 - core index']
  #allocation1 [shape = 'u32[144,128]{1,0:T(1,128)}', space=vmem, size = 0x12000, scoped, tag = 'internal scratch']
  %s0 = inlined_call_operand.vmem [shape: f32[8,256], index: 0, kind: input, shape index: {}]
  %s1 = inlined_call_operand.hbm [shape: bf16[256,512], index: 1, kind: input, shape index: {}]
  %s2 = inlined_call_operand.hbm [shape: f32[3,512], index: 2, kind: input, shape index: {}]
  %s3 = inlined_call_operand.hbm [shape: bf16[512,256], index: 3, kind: input, shape index: {}]
  %s4 = inlined_call_operand.hbm [shape: f32[3,256], index: 4, kind: input, shape index: {}]
  %s5 = inlined_call_operand.vmem [shape: bf16[256,128], index: 5, kind: input, shape index: {}]
  %s6 = inlined_call_operand.hbm [shape: f32[3,128], index: 6, kind: input, shape index: {}]
  %s7 = inlined_call_operand.vmem [shape: bf16[128,64], index: 7, kind: input, shape index: {}]
  %s8 = inlined_call_operand.hbm [shape: f32[3,64], index: 8, kind: input, shape index: {}]
  %s9 = inlined_call_operand.vmem [shape: bf16[64,32], index: 9, kind: input, shape index: {}]
  %s10 = inlined_call_operand.hbm [shape: f32[3,32], index: 10, kind: input, shape index: {}]
  %s11 = inlined_call_operand.hbm [shape: bf16[32,128], index: 11, kind: input, shape index: {}]
  %s12 = inlined_call_operand.vmem [shape: f32[1,128], index: 12, kind: input, shape index: {}]
  %s13 = inlined_call_operand.hbm [shape: f32[8,128], index: 13, kind: output, shape index: {}]
  %s14 = sld [smem:[#allocation0]]
  $region94: #{category_head_forward.1} parent=0
    _
  %s16 = ssub.s32 1, %s14
  %s17 = scalar_select 0, %s16, %s14
  $region1: #{category_head_forward.1} parent=0
    #allocation2 [shape = 'u8[262144]{0}', space=vmem, size = 0x40000, scoped, tag = 'input window, operand 1, single buffered']
    #allocation3 [shape = 's32[1]{0}', space=sflag, size = 0x4, scoped, tag = 'scoped memory for category_head_forward.1']
    #allocation4 [shape = 's32[1]{0}', space=sflag, size = 0x4, scoped, tag = 'scoped memory for category_head_forward.1']
    #allocation5 [shape = 'u8[8192]{0}', space=vmem, size = 0x2000, scoped, tag = 'input window, operand 2, single buffered']
    #allocation6 [shape = 's32[1]{0}', space=sflag, size = 0x4, scoped, tag = 'scoped memory for category_head_forward.1']
    #allocation7 [shape = 'u8[262144]{0}', space=vmem, size = 0x40000, scoped, tag = 'input window, operand 3, single buffered']
    #allocation8 [shape = 'u8[4096]{0}', space=vmem, size = 0x1000, scoped, tag = 'input window, operand 4, single buffered']
    #allocation9 [shape = 's32[1]{0}', space=sflag, size = 0x4, scoped, tag = 'scoped memory for category_head_forward.1']
    #allocation10 [shape = 'u8[2048]{0}', space=vmem, size = 0x800, scoped, tag = 'input window, operand 6, single buffered']
    #allocation11 [shape = 'u8[2048]{0}', space=vmem, size = 0x800, scoped, tag = 'input window, operand 8, single buffered']
    #allocation12 [shape = 's32[1]{0}', space=sflag, size = 0x4, scoped, tag = 'scoped memory for category_head_forward.1']
    #allocation13 [shape = 'u8[2048]{0}', space=vmem, size = 0x800, scoped, tag = 'input window, operand 10, single buffered']
    #allocation14 [shape = 'u8[8192]{0}', space=vmem, size = 0x2000, scoped, tag = 'input window, operand 11, single buffered']
    #allocation15 [shape = 's32[1]{0}', space=sflag, size = 0x4, scoped, tag = 'scoped memory for category_head_forward.1']
    #allocation16 [shape = 'u8[4096]{0}', space=vmem, size = 0x1000, scoped, tag = 'output window, operand 0, single buffered']
    %18 = vsyncpa [#allocation3], 0
    %19 = vsyncpa [#allocation6], 0
    %20 = vsyncpa [#allocation9], 0
    %21 = vsyncpa [#allocation12], 0
    %22 = vsyncpa [#allocation15], 0
    %23 = vsyncpa [#allocation4], 0
    // Predicated region
    $region2: #{category_head_forward.1} parent=1 // pred_check
      _
    $region3: #{category_head_forward.1} parent=1 // pred_check_branch
      %25 = sbr.rel (0) target = $region5
    $region4: #{category_head_forward.1} parent=1 // pred_region
      _
    $region5: #{category_head_forward.1} parent=1 // pred_fallthru
      _
    // Predicated region
    $region6: #{category_head_forward.1} parent=1 // pred_check
      _
    $region7: #{category_head_forward.1} parent=1 // pred_check_branch
      %27 = sbr.rel (0) target = $region9
    $region8: #{category_head_forward.1} parent=1 // pred_region
      %s29 = ssub.s32 8192, 8192
      %30 = vsyncadd [#allocation3], %s29
      %s31 = sshll.u32 [#allocation2], 4
      %s32 = int_to_ptr.vmem [resolvable:$true] %s31
      %37 = dma.hbm_to_vmem [thread:$0]  %s1, 8192, %s32, [#allocation3], 256, 256, 16
    $region9: #{category_head_forward.1} parent=1 // pred_fallthru
      _
    // Predicated region
    $region10: #{category_head_forward.1} parent=1 // pred_check
      _
    $region11: #{category_head_forward.1} parent=1 // pred_check_branch
      %39 = sbr.rel (0) target = $region13
    $region12: #{category_head_forward.1} parent=1 // pred_region
      %s41 = ssub.s32 256, 256
      %42 = vsyncadd [#allocation6], %s41
      %s44 = sshll.u32 [#allocation5], 4
      %s45 = int_to_ptr.vmem [resolvable:$true] %s44
      %47 = dma.hbm_to_vmem [thread:$0]  %s2, 256, %s45, [#allocation6]
    $region13: #{category_head_forward.1} parent=1 // pred_fallthru
      _
    // Predicated region
    $region14: #{category_head_forward.1} parent=1 // pred_check
      _
    $region15: #{category_head_forward.1} parent=1 // pred_check_branch
      %49 = sbr.rel (0) target = $region17
    $region16: #{category_head_forward.1} parent=1 // pred_region
      %s51 = ssub.s32 8192, 8192
      %52 = vsyncadd [#allocation6], %s51
      %s53 = sshll.u32 [#allocation7], 4
      %s54 = int_to_ptr.vmem [resolvable:$true] %s53
      %59 = dma.hbm_to_vmem [thread:$0]  %s3, 8192, %s54, [#allocation6], 128, 128, 8
    $region17: #{category_head_forward.1} parent=1 // pred_fallthru
      _
    // Predicated region
    $region18: #{category_head_forward.1} parent=1 // pred_check
      _
    $region19: #{category_head_forward.1} parent=1 // pred_check_branch
      %61 = sbr.rel (0) target = $region21
    $region20: #{category_head_forward.1} parent=1 // pred_region
      %s63 = ssub.s32 128, 128
      %64 = vsyncadd [#allocation9], %s63
      %s66 = sshll.u32 [#allocation8], 4
      %s67 = int_to_ptr.vmem [resolvable:$true] %s66
      %69 = dma.hbm_to_vmem [thread:$0]  %s4, 128, %s67, [#allocation9]
    $region21: #{category_head_forward.1} parent=1 // pred_fallthru
      _
    // Predicated region
    $region22: #{category_head_forward.1} parent=1 // pred_check
      _
    $region23: #{category_head_forward.1} parent=1 // pred_check_branch
      %71 = sbr.rel (0) target = $region25
    $region24: #{category_head_forward.1} parent=1 // pred_region
      _
    $region25: #{category_head_forward.1} parent=1 // pred_fallthru
      _
    // Predicated region
    $region26: #{category_head_forward.1} parent=1 // pred_check
      _
    $region27: #{category_head_forward.1} parent=1 // pred_check_branch
      %73 = sbr.rel (0) target = $region29
    $region28: #{category_head_forward.1} parent=1 // pred_region
      %s75 = ssub.s32 64, 64
      %76 = vsyncadd [#allocation9], %s75
      %s78 = sshll.u32 [#allocation10], 4
      %s79 = int_to_ptr.vmem [resolvable:$true] %s78
      %81 = dma.hbm_to_vmem [thread:$0]  %s6, 64, %s79, [#allocation9]
    $region29: #{category_head_forward.1} parent=1 // pred_fallthru
      _
    // Predicated region
    $region30: #{category_head_forward.1} parent=1 // pred_check
      _
    $region31: #{category_head_forward.1} parent=1 // pred_check_branch
      %83 = sbr.rel (0) target = $region33
    $region32: #{category_head_forward.1} parent=1 // pred_region
      _
    $region33: #{category_head_forward.1} parent=1 // pred_fallthru
      _
    // Predicated region
    $region34: #{category_head_forward.1} parent=1 // pred_check
      _
    $region35: #{category_head_forward.1} parent=1 // pred_check_branch
      %85 = sbr.rel (0) target = $region37
    $region36: #{category_head_forward.1} parent=1 // pred_region
      %s87 = ssub.s32 64, 64
      %88 = vsyncadd [#allocation12], %s87
      %s90 = sshll.u32 [#allocation11], 4
      %s91 = int_to_ptr.vmem [resolvable:$true] %s90
      %93 = dma.hbm_to_vmem [thread:$0]  %s8, 64, %s91, [#allocation12]
    $region37: #{category_head_forward.1} parent=1 // pred_fallthru
      _
    // Predicated region
    $region38: #{category_head_forward.1} parent=1 // pred_check
      _
    $region39: #{category_head_forward.1} parent=1 // pred_check_branch
      %95 = sbr.rel (0) target = $region41
    $region40: #{category_head_forward.1} parent=1 // pred_region
      _
    $region41: #{category_head_forward.1} parent=1 // pred_fallthru
      _
    // Predicated region
    $region42: #{category_head_forward.1} parent=1 // pred_check
      _
    $region43: #{category_head_forward.1} parent=1 // pred_check_branch
      %97 = sbr.rel (0) target = $region45
    $region44: #{category_head_forward.1} parent=1 // pred_region
      %s99 = ssub.s32 64, 64
      %100 = vsyncadd [#allocation12], %s99
      %s102 = sshll.u32 [#allocation13], 4
      %s103 = int_to_ptr.vmem [resolvable:$true] %s102
      %105 = dma.hbm_to_vmem [thread:$0]  %s10, 64, %s103, [#allocation12]
    $region45: #{category_head_forward.1} parent=1 // pred_fallthru
      _
    // Predicated region
    $region46: #{category_head_forward.1} parent=1 // pred_check
      _
    $region47: #{category_head_forward.1} parent=1 // pred_check_branch
      %107 = sbr.rel (0) target = $region49
    $region48: #{category_head_forward.1} parent=1 // pred_region
      %s109 = ssub.s32 256, 256
      %110 = vsyncadd [#allocation15], %s109
      %s111 = sshll.u32 [#allocation14], 4
      %s112 = int_to_ptr.vmem [resolvable:$true] %s111
      %117 = dma.hbm_to_vmem [thread:$0]  %s11, 256, %s112, [#allocation15], 64, 64, 4
    $region49: #{category_head_forward.1} parent=1 // pred_fallthru
      _
    // Predicated region
    $region50: #{category_head_forward.1} parent=1 // pred_check
      _
    $region51: #{category_head_forward.1} parent=1 // pred_check_branch
      %119 = sbr.rel (0) target = $region53
    $region52: #{category_head_forward.1} parent=1 // pred_region
      _
    $region53: #{category_head_forward.1} parent=1 // pred_fallthru
      _
    // Predicated region
    $region54: #{category_head_forward.1} parent=1 // pred_check
      _
    $region55: #{category_head_forward.1} parent=1 // pred_check_branch
      %121 = sbr.rel (0) target = $region57
    $region56: #{category_head_forward.1} parent=1 // pred_region
      %122 = dma.done [#allocation3], 8192
    $region57: #{category_head_forward.1} parent=1 // pred_fallthru
      _
    // Predicated region
    $region58: #{category_head_forward.1} parent=1 // pred_check
      _
    $region59: #{category_head_forward.1} parent=1 // pred_check_branch
      %124 = sbr.rel (0) target = $region61
    $region60: #{category_head_forward.1} parent=1 // pred_region
      %125 = dma.done [#allocation6], 256
    $region61: #{category_head_forward.1} parent=1 // pred_fallthru
      _
    // Predicated region
    $region62: #{category_head_forward.1} parent=1 // pred_check
      _
    $region63: #{category_head_forward.1} parent=1 // pred_check_branch
      %127 = sbr.rel (0) target = $region65
    $region64: #{category_head_forward.1} parent=1 // pred_region
      %128 = dma.done [#allocation6], 8192
    $region65: #{category_head_forward.1} parent=1 // pred_fallthru
      _
    // Predicated region
    $region66: #{category_head_forward.1} parent=1 // pred_check
      _
    $region67: #{category_head_forward.1} parent=1 // pred_check_branch
      %130 = sbr.rel (0) target = $region69
    $region68: #{category_head_forward.1} parent=1 // pred_region
      %131 = dma.done [#allocation9], 128
    $region69: #{category_head_forward.1} parent=1 // pred_fallthru
      _
    // Predicated region
    $region70: #{category_head_forward.1} parent=1 // pred_check
      _
    $region71: #{category_head_forward.1} parent=1 // pred_check_branch
      %133 = sbr.rel (0) target = $region73
    $region72: #{category_head_forward.1} parent=1 // pred_region
      %134 = dma.done [#allocation9], 64
    $region73: #{category_head_forward.1} parent=1 // pred_fallthru
      _
    // Predicated region
    $region74: #{category_head_forward.1} parent=1 // pred_check
      _
    $region75: #{category_head_forward.1} parent=1 // pred_check_branch
      %136 = sbr.rel (0) target = $region77
    $region76: #{category_head_forward.1} parent=1 // pred_region
      %137 = dma.done [#allocation12], 64
    $region77: #{category_head_forward.1} parent=1 // pred_fallthru
      _
    // Predicated region
    $region78: #{category_head_forward.1} parent=1 // pred_check
      _
    $region79: #{category_head_forward.1} parent=1 // pred_check_branch
      %139 = sbr.rel (0) target = $region81
    $region80: #{category_head_forward.1} parent=1 // pred_region
      %140 = dma.done [#allocation12], 64
    $region81: #{category_head_forward.1} parent=1 // pred_fallthru
      _
    // Predicated region
    $region82: #{category_head_forward.1} parent=1 // pred_check
      _
    $region83: #{category_head_forward.1} parent=1 // pred_check_branch
      %142 = sbr.rel (0) target = $region85
    $region84: #{category_head_forward.1} parent=1 // pred_region
      %143 = dma.done [#allocation15], 256
    $region85: #{category_head_forward.1} parent=1 // pred_fallthru
      _
    %v145 = vld [vmem:[%s0] sm:$0xff]
    %v146 = vld [vmem:[%s0 + $0x8] sm:$0xff]
    %v147 = vld [vmem:[#allocation5] sm:$0x77]
    %v148 = vld [vmem:[#allocation5 + $0x8] sm:$0x77]
    %v149 = vpack.c.bf16 %v145, %v145
    %v150 = vpack.c.bf16 %v146, %v146
    %v151 = vld [vmem:[#allocation2] sm:$0xff]
    %v152 = vld [vmem:[#allocation2 + $0x8] sm:$0xff]
    %v153 = vld [vmem:[#allocation2 + $0x10] sm:$0xff]
    %v154 = vld [vmem:[#allocation2 + $0x18] sm:$0xff]
    %v155 = vld [vmem:[#allocation2 + $0x20] sm:$0xff]
    %v156 = vld [vmem:[#allocation2 + $0x28] sm:$0xff]
    %v157 = vld [vmem:[#allocation2 + $0x30] sm:$0xff]
    %v158 = vld [vmem:[#allocation2 + $0x38] sm:$0xff]
    %v159 = vld [vmem:[#allocation2 + $0x40] sm:$0xff]
    %v160 = vld [vmem:[#allocation2 + $0x48] sm:$0xff]
    %v161 = vld [vmem:[#allocation2 + $0x50] sm:$0xff]
    %v162 = vld [vmem:[#allocation2 + $0x58] sm:$0xff]
    %v163 = vld [vmem:[#allocation2 + $0x60] sm:$0xff]
    %v164 = vld [vmem:[#allocation2 + $0x68] sm:$0xff]
    %v165 = vld [vmem:[#allocation2 + $0x70] sm:$0xff]
    %v166 = vld [vmem:[#allocation2 + $0x78] sm:$0xff]
    %v167 = vld [vmem:[#allocation2 + $0x80] sm:$0xff]
    %v168 = vld [vmem:[#allocation2 + $0x88] sm:$0xff]
    %v169 = vld [vmem:[#allocation2 + $0x90] sm:$0xff]
    %v170 = vld [vmem:[#allocation2 + $0x98] sm:$0xff]
    %v171 = vld [vmem:[#allocation2 + $0xa0] sm:$0xff]
    %v172 = vld [vmem:[#allocation2 + $0xa8] sm:$0xff]
    %v173 = vld [vmem:[#allocation2 + $0xb0] sm:$0xff]
    %v174 = vld [vmem:[#allocation2 + $0xb8] sm:$0xff]
    %v175 = vld [vmem:[#allocation2 + $0xc0] sm:$0xff]
    %v176 = vld [vmem:[#allocation2 + $0xc8] sm:$0xff]
    %v177 = vld [vmem:[#allocation2 + $0xd0] sm:$0xff]
    %v178 = vld [vmem:[#allocation2 + $0xd8] sm:$0xff]
    %v179 = vld [vmem:[#allocation2 + $0xe0] sm:$0xff]
    %v180 = vld [vmem:[#allocation2 + $0xe8] sm:$0xff]
    %v181 = vld [vmem:[#allocation2 + $0xf0] sm:$0xff]
    %v182 = vld [vmem:[#allocation2 + $0xf8] sm:$0xff]
    %v183 = vld [vmem:[#allocation2 + $0x100] sm:$0xff]
    %v184 = vld [vmem:[#allocation2 + $0x108] sm:$0xff]
    %v185 = vld [vmem:[#allocation2 + $0x110] sm:$0xff]
    %v186 = vld [vmem:[#allocation2 + $0x118] sm:$0xff]
    %v187 = vld [vmem:[#allocation2 + $0x120] sm:$0xff]
    %v188 = vld [vmem:[#allocation2 + $0x128] sm:$0xff]
    %v189 = vld [vmem:[#allocation2 + $0x130] sm:$0xff]
    %v190 = vld [vmem:[#allocation2 + $0x138] sm:$0xff]
    %v191 = vld [vmem:[#allocation2 + $0x140] sm:$0xff]
    %v192 = vld [vmem:[#allocation2 + $0x148] sm:$0xff]
    %v193 = vld [vmem:[#allocation2 + $0x150] sm:$0xff]
    %v194 = vld [vmem:[#allocation2 + $0x158] sm:$0xff]
    %v195 = vld [vmem:[#allocation2 + $0x160] sm:$0xff]
    %v196 = vld [vmem:[#allocation2 + $0x168] sm:$0xff]
    %v197 = vld [vmem:[#allocation2 + $0x170] sm:$0xff]
    %v198 = vld [vmem:[#allocation2 + $0x178] sm:$0xff]
    %v199 = vld [vmem:[#allocation2 + $0x180] sm:$0xff]
    %v200 = vld [vmem:[#allocation2 + $0x188] sm:$0xff]
    %v201 = vld [vmem:[#allocation2 + $0x190] sm:$0xff]
    %v202 = vld [vmem:[#allocation2 + $0x198] sm:$0xff]
    %v203 = vld [vmem:[#allocation2 + $0x1a0] sm:$0xff]
    %v204 = vld [vmem:[#allocation2 + $0x1a8] sm:$0xff]
    %v205 = vld [vmem:[#allocation2 + $0x1b0] sm:$0xff]
    %v206 = vld [vmem:[#allocation2 + $0x1b8] sm:$0xff]
    %v207 = vld [vmem:[#allocation2 + $0x1c0] sm:$0xff]
    %v208 = vld [vmem:[#allocation2 + $0x1c8] sm:$0xff]
    %v209 = vld [vmem:[#allocation2 + $0x1d0] sm:$0xff]
    %v210 = vld [vmem:[#allocation2 + $0x1d8] sm:$0xff]
    %v211 = vld [vmem:[#allocation2 + $0x1e0] sm:$0xff]
    %v212 = vld [vmem:[#allocation2 + $0x1e8] sm:$0xff]
    %v213 = vld [vmem:[#allocation2 + $0x1f0] sm:$0xff]
    %v214 = vld [vmem:[#allocation2 + $0x1f8] sm:$0xff]
    %v217 = vlaneseq
    %v218 = vshrl.u32 %v217, 7
    %v219 = vsub.s32 0, %v218
    %v220 = vrot.slane %v147, %v219
    %v221 = vlaneseq
    %v222 = vshrl.u32 %v221, 7
    %v223 = vsub.s32 4, %v222
    %v224 = vrot.slane %v147, %v223
    %v225 = vlaneseq
    %v226 = vshrl.u32 %v225, 7
    %v227 = vsub.s32 0, %v226
    %v228 = vrot.slane %v148, %v227
    %v229 = vlaneseq
    %v230 = vshrl.u32 %v229, 7
    %v231 = vsub.s32 4, %v230
    %v232 = vrot.slane %v148, %v231
    %v237 = vlaneseq
    %v238 = vshrl.u32 %v237, 7
    %v239 = vsub.s32 0, %v238
    %v240 = vrot.slane %v220, %v239
    %v241 = vlaneseq
    %v242 = vshrl.u32 %v241, 7
    %v243 = vsub.s32 0, %v242
    %v244 = vrot.slane %v224, %v243
    %v245 = vlaneseq
    %v246 = vshrl.u32 %v245, 7
    %v247 = vsub.s32 0, %v246
    %v248 = vrot.slane %v228, %v247
    %v249 = vlaneseq
    %v250 = vshrl.u32 %v249, 7
    %v251 = vsub.s32 0, %v250
    %v252 = vrot.slane %v232, %v251
    %v317 = vunpack.c.l.b16 %v151
    %v318 = vunpack.c.h.b16 %v151
    %v319 = vunpack.c.l.b16 %v152
    %v320 = vunpack.c.h.b16 %v152
    %v321 = vunpack.c.l.b16 %v153
    %v322 = vunpack.c.h.b16 %v153
    %v323 = vunpack.c.l.b16 %v154
    %v324 = vunpack.c.h.b16 %v154
    %v325 = vunpack.c.l.b16 %v155
    %v326 = vunpack.c.h.b16 %v155
    %v327 = vunpack.c.l.b16 %v156
    %v328 = vunpack.c.h.b16 %v156
    %v329 = vunpack.c.l.b16 %v157
    %v330 = vunpack.c.h.b16 %v157
    %v331 = vunpack.c.l.b16 %v158
    %v332 = vunpack.c.h.b16 %v158
    %v333 = vunpack.c.l.b16 %v159
    %v334 = vunpack.c.h.b16 %v159
    %v335 = vunpack.c.l.b16 %v160
    %v336 = vunpack.c.h.b16 %v160
    %v337 = vunpack.c.l.b16 %v161
    %v338 = vunpack.c.h.b16 %v161
    %v339 = vunpack.c.l.b16 %v162
    %v340 = vunpack.c.h.b16 %v162
    %v341 = vunpack.c.l.b16 %v163
    %v342 = vunpack.c.h.b16 %v163
    %v343 = vunpack.c.l.b16 %v164
    %v344 = vunpack.c.h.b16 %v164
    %v345 = vunpack.c.l.b16 %v165
    %v346 = vunpack.c.h.b16 %v165
    %v347 = vunpack.c.l.b16 %v166
    %v348 = vunpack.c.h.b16 %v166
    %v349 = vunpack.c.l.b16 %v167
    %v350 = vunpack.c.h.b16 %v167
    %v351 = vunpack.c.l.b16 %v168
    %v352 = vunpack.c.h.b16 %v168
    %v353 = vunpack.c.l.b16 %v169
    %v354 = vunpack.c.h.b16 %v169
    %v355 = vunpack.c.l.b16 %v170
    %v356 = vunpack.c.h.b16 %v170
    %v357 = vunpack.c.l.b16 %v171
    %v358 = vunpack.c.h.b16 %v171
    %v359 = vunpack.c.l.b16 %v172
    %v360 = vunpack.c.h.b16 %v172
    %v361 = vunpack.c.l.b16 %v173
    %v362 = vunpack.c.h.b16 %v173
    %v363 = vunpack.c.l.b16 %v174
    %v364 = vunpack.c.h.b16 %v174
    %v365 = vunpack.c.l.b16 %v175
    %v366 = vunpack.c.h.b16 %v175
    %v367 = vunpack.c.l.b16 %v176
    %v368 = vunpack.c.h.b16 %v176
    %v369 = vunpack.c.l.b16 %v177
    %v370 = vunpack.c.h.b16 %v177
    %v371 = vunpack.c.l.b16 %v178
    %v372 = vunpack.c.h.b16 %v178
    %v373 = vunpack.c.l.b16 %v179
    %v374 = vunpack.c.h.b16 %v179
    %v375 = vunpack.c.l.b16 %v180
    %v376 = vunpack.c.h.b16 %v180
    %v377 = vunpack.c.l.b16 %v181
    %v378 = vunpack.c.h.b16 %v181
    %v379 = vunpack.c.l.b16 %v182
    %v380 = vunpack.c.h.b16 %v182
    %v381 = vunpack.c.l.b16 %v183
    %v382 = vunpack.c.h.b16 %v183
    %v383 = vunpack.c.l.b16 %v184
    %v384 = vunpack.c.h.b16 %v184
    %v385 = vunpack.c.l.b16 %v185
    %v386 = vunpack.c.h.b16 %v185
    %v387 = vunpack.c.l.b16 %v186
    %v388 = vunpack.c.h.b16 %v186
    %v389 = vunpack.c.l.b16 %v187
    %v390 = vunpack.c.h.b16 %v187
    %v391 = vunpack.c.l.b16 %v188
    %v392 = vunpack.c.h.b16 %v188
    %v393 = vunpack.c.l.b16 %v189
    %v394 = vunpack.c.h.b16 %v189
    %v395 = vunpack.c.l.b16 %v190
    %v396 = vunpack.c.h.b16 %v190
    %v397 = vunpack.c.l.b16 %v191
    %v398 = vunpack.c.h.b16 %v191
    %v399 = vunpack.c.l.b16 %v192
    %v400 = vunpack.c.h.b16 %v192
    %v401 = vunpack.c.l.b16 %v193
    %v402 = vunpack.c.h.b16 %v193
    %v403 = vunpack.c.l.b16 %v194
    %v404 = vunpack.c.h.b16 %v194
    %v405 = vunpack.c.l.b16 %v195
    %v406 = vunpack.c.h.b16 %v195
    %v407 = vunpack.c.l.b16 %v196
    %v408 = vunpack.c.h.b16 %v196
    %v409 = vunpack.c.l.b16 %v197
    %v410 = vunpack.c.h.b16 %v197
    %v411 = vunpack.c.l.b16 %v198
    %v412 = vunpack.c.h.b16 %v198
    %v413 = vunpack.c.l.b16 %v199
    %v414 = vunpack.c.h.b16 %v199
    %v415 = vunpack.c.l.b16 %v200
    %v416 = vunpack.c.h.b16 %v200
    %v417 = vunpack.c.l.b16 %v201
    %v418 = vunpack.c.h.b16 %v201
    %v419 = vunpack.c.l.b16 %v202
    %v420 = vunpack.c.h.b16 %v202
    %v421 = vunpack.c.l.b16 %v203
    %v422 = vunpack.c.h.b16 %v203
    %v423 = vunpack.c.l.b16 %v204
    %v424 = vunpack.c.h.b16 %v204
    %v425 = vunpack.c.l.b16 %v205
    %v426 = vunpack.c.h.b16 %v205
    %v427 = vunpack.c.l.b16 %v206
    %v428 = vunpack.c.h.b16 %v206
    %v429 = vunpack.c.l.b16 %v207
    %v430 = vunpack.c.h.b16 %v207
    %v431 = vunpack.c.l.b16 %v208
    %v432 = vunpack.c.h.b16 %v208
    %v433 = vunpack.c.l.b16 %v209
    %v434 = vunpack.c.h.b16 %v209
    %v435 = vunpack.c.l.b16 %v210
    %v436 = vunpack.c.h.b16 %v210
    %v437 = vunpack.c.l.b16 %v211
    %v438 = vunpack.c.h.b16 %v211
    %v439 = vunpack.c.l.b16 %v212
    %v440 = vunpack.c.h.b16 %v212
    %v441 = vunpack.c.l.b16 %v213
    %v442 = vunpack.c.h.b16 %v213
    %v443 = vunpack.c.l.b16 %v214
    %v444 = vunpack.c.h.b16 %v214
    %v445 = vpack.c.b16 %v321, %v317
    %v446 = vpack.c.b16 %v322, %v318
    %v447 = vpack.c.b16 %v323, %v319
    %v448 = vpack.c.b16 %v324, %v320
    %v449 = vpack.c.b16 %v329, %v325
    %v450 = vpack.c.b16 %v330, %v326
    %v451 = vpack.c.b16 %v331, %v327
    %v452 = vpack.c.b16 %v332, %v328
    %v453 = vpack.c.b16 %v337, %v333
    %v454 = vpack.c.b16 %v338, %v334
    %v455 = vpack.c.b16 %v339, %v335
    %v456 = vpack.c.b16 %v340, %v336
    %v457 = vpack.c.b16 %v345, %v341
    %v458 = vpack.c.b16 %v346, %v342
    %v459 = vpack.c.b16 %v347, %v343
    %v460 = vpack.c.b16 %v348, %v344
    %v461 = vpack.c.b16 %v353, %v349
    %v462 = vpack.c.b16 %v354, %v350
    %v463 = vpack.c.b16 %v355, %v351
    %v464 = vpack.c.b16 %v356, %v352
    %v465 = vpack.c.b16 %v361, %v357
    %v466 = vpack.c.b16 %v362, %v358
    %v467 = vpack.c.b16 %v363, %v359
    %v468 = vpack.c.b16 %v364, %v360
    %v469 = vpack.c.b16 %v369, %v365
    %v470 = vpack.c.b16 %v370, %v366
    %v471 = vpack.c.b16 %v371, %v367
    %v472 = vpack.c.b16 %v372, %v368
    %v473 = vpack.c.b16 %v377, %v373
    %v474 = vpack.c.b16 %v378, %v374
    %v475 = vpack.c.b16 %v379, %v375
    %v476 = vpack.c.b16 %v380, %v376
    %v477 = vpack.c.b16 %v385, %v381
    %v478 = vpack.c.b16 %v386, %v382
    %v479 = vpack.c.b16 %v387, %v383
    %v480 = vpack.c.b16 %v388, %v384
    %v481 = vpack.c.b16 %v393, %v389
    %v482 = vpack.c.b16 %v394, %v390
    %v483 = vpack.c.b16 %v395, %v391
    %v484 = vpack.c.b16 %v396, %v392
    %v485 = vpack.c.b16 %v401, %v397
    %v486 = vpack.c.b16 %v402, %v398
    %v487 = vpack.c.b16 %v403, %v399
    %v488 = vpack.c.b16 %v404, %v400
    %v489 = vpack.c.b16 %v409, %v405
    %v490 = vpack.c.b16 %v410, %v406
    %v491 = vpack.c.b16 %v411, %v407
    %v492 = vpack.c.b16 %v412, %v408
    %v493 = vpack.c.b16 %v417, %v413
    %v494 = vpack.c.b16 %v418, %v414
    %v495 = vpack.c.b16 %v419, %v415
    %v496 = vpack.c.b16 %v420, %v416
    %v497 = vpack.c.b16 %v425, %v421
    %v498 = vpack.c.b16 %v426, %v422
    %v499 = vpack.c.b16 %v427, %v423
    %v500 = vpack.c.b16 %v428, %v424
    %v501 = vpack.c.b16 %v433, %v429
    %v502 = vpack.c.b16 %v434, %v430
    %v503 = vpack.c.b16 %v435, %v431
    %v504 = vpack.c.b16 %v436, %v432
    %v505 = vpack.c.b16 %v441, %v437
    %v506 = vpack.c.b16 %v442, %v438
    %v507 = vpack.c.b16 %v443, %v439
    %v508 = vpack.c.b16 %v444, %v440
    %573 = vmatprep.subr.bf16.mxu0 %v474
    %574 = vmatpush1.bf16.msra.mxu0 %v473
    %575 = vmatprep.subr.bf16.mxu0 %v470
    %576 = vmatpush1.bf16.msra.mxu0 %v469
    %577 = vmatprep.subr.bf16.mxu0 %v466
    %578 = vmatpush1.bf16.msra.mxu0 %v465
    %579 = vmatprep.subr.bf16.mxu0 %v462
    %580 = vmatpush1.bf16.msra.mxu0 %v461
    %581 = vmatprep.subr.bf16.mxu0 %v458
    %582 = vmatpush1.bf16.msra.mxu0 %v457
    %583 = vmatprep.subr.bf16.mxu0 %v454
    %584 = vmatpush1.bf16.msra.mxu0 %v453
    %585 = vmatprep.subr.bf16.mxu0 %v450
    %586 = vmatpush1.bf16.msra.mxu0 %v449
    %587 = vmatprep.subr.bf16.mxu0 %v446
    %588 = vmatpush1.bf16.msra.mxu0 %v445
    %589 = vmatprep.subr.bf16.mxu0 %v506
    %590 = vmatpush2.bf16.msra.mxu0 %v505
    %591 = vmatprep.subr.bf16.mxu0 %v502
    %592 = vmatpush2.bf16.msra.mxu0 %v501
    %593 = vmatprep.subr.bf16.mxu0 %v498
    %594 = vmatpush2.bf16.msra.mxu0 %v497
    %595 = vmatprep.subr.bf16.mxu0 %v494
    %596 = vmatpush2.bf16.msra.mxu0 %v493
    %597 = vmatprep.subr.bf16.mxu0 %v490
    %598 = vmatpush2.bf16.msra.mxu0 %v489
    %599 = vmatprep.subr.bf16.mxu0 %v486
    %600 = vmatpush2.bf16.msra.mxu0 %v485
    %601 = vmatprep.subr.bf16.mxu0 %v482
    %602 = vmatpush2.bf16.msra.mxu0 %v481
    %603 = vmatprep.subr.bf16.mxu0 %v478
    %604 = vmatpush2.bf16.msra.mxu0 %v477
    %605 = vmatprep.mubr.bf16.mxu0 %v150
    %606 = vmatmul.mubr.bf16.gmra.mxu0 %v149
    %v607 = vpop.f32.mrf.mxu0
    %v608 = vadd.f32 %v240, %v607
    %v609 = vpop.f32.mrf.mxu0
    %v610 = vadd.f32 %v244, %v609
    %v611 = vpop.f32.mrf.mxu0
    %v612 = vpop.f32.mrf.mxu0
    %613 = vdwg.mxu0
    %614 = vmatprep.subr.bf16.mxu0 %v476
    %615 = vmatpush1.bf16.msra.mxu0 %v475
    %616 = vmatprep.subr.bf16.mxu0 %v472
    %617 = vmatpush1.bf16.msra.mxu0 %v471
    %618 = vmatprep.subr.bf16.mxu0 %v468
    %619 = vmatpush1.bf16.msra.mxu0 %v467
    %620 = vmatprep.subr.bf16.mxu0 %v464
    %621 = vmatpush1.bf16.msra.mxu0 %v463
    %622 = vmatprep.subr.bf16.mxu0 %v460
    %623 = vmatpush1.bf16.msra.mxu0 %v459
    %624 = vmatprep.subr.bf16.mxu0 %v456
    %625 = vmatpush1.bf16.msra.mxu0 %v455
    %626 = vmatprep.subr.bf16.mxu0 %v452
    %627 = vmatpush1.bf16.msra.mxu0 %v451
    %628 = vmatprep.subr.bf16.mxu0 %v448
    %629 = vmatpush1.bf16.msra.mxu0 %v447
    %630 = vmatprep.subr.bf16.mxu0 %v508
    %631 = vmatpush2.bf16.msra.mxu0 %v507
    %632 = vmatprep.subr.bf16.mxu0 %v504
    %633 = vmatpush2.bf16.msra.mxu0 %v503
    %634 = vmatprep.subr.bf16.mxu0 %v500
    %635 = vmatpush2.bf16.msra.mxu0 %v499
    %636 = vmatprep.subr.bf16.mxu0 %v496
    %637 = vmatpush2.bf16.msra.mxu0 %v495
    %638 = vmatprep.subr.bf16.mxu0 %v492
    %639 = vmatpush2.bf16.msra.mxu0 %v491
    %640 = vmatprep.subr.bf16.mxu0 %v488
    %641 = vmatpush2.bf16.msra.mxu0 %v487
    %642 = vmatprep.subr.bf16.mxu0 %v484
    %643 = vmatpush2.bf16.msra.mxu0 %v483
    %644 = vmatprep.subr.bf16.mxu0 %v480
    %645 = vmatpush2.bf16.msra.mxu0 %v479
    %646 = vmatprep.mubr.bf16.mxu0 %v150
    %647 = vmatmul.mubr.bf16.gmra.mxu0 %v149
    %v648 = vpop.f32.mrf.mxu0
    %v649 = vadd.f32 %v248, %v648
    %v650 = vpop.f32.mrf.mxu0
    %v651 = vadd.f32 %v252, %v650
    %v652 = vpop.f32.mrf.mxu0
    %v653 = vpop.f32.mrf.mxu0
    %654 = vdwg.mxu0
    %v655 = vadd.f32 %v608, %v610
    %v656 = vadd.f32 %v655, %v649
    %v657 = vadd.f32 %v656, %v651
    %658 = vadd.xlane.f32.xlu0 %v657
    %v659 = vpop.xlane.xlu0 %658
    %v660 = vrcp.pop 512.0
    %v661 = vmul.f32 %v659, %v660
    %v662 = vsub.f32 %v608, %v661
    %v663 = vsub.f32 %v610, %v661
    %v664 = vsub.f32 %v649, %v661
    %v665 = vsub.f32 %v651, %v661
    %v666 = vmul.f32 %v662, %v662
    %v667 = vmul.f32 %v663, %v663
    %v668 = vmul.f32 %v664, %v664
    %v669 = vmul.f32 %v665, %v665
    %v670 = vadd.f32 %v666, %v667
    %v671 = vadd.f32 %v670, %v668
    %v672 = vadd.f32 %v671, %v669
    %673 = vadd.xlane.f32.xlu0 %v672
    %v674 = vpop.xlane.xlu0 %673
    %v675 = vmul.f32 %v674, %v660
    %v676 = vadd.f32 %v675, 1e-05
    %v677 = vrsqrt.pop %v676
    %v678 = vmul.f32 %v662, %v677
    %v679 = vmul.f32 %v663, %v677
    %v680 = vmul.f32 %v664, %v677
    %v681 = vmul.f32 %v665, %v677
    %v682 = vlaneseq
    %v683 = vshrl.u32 %v682, 7
    %v684 = vsub.s32 1, %v683
    %v685 = vrot.slane %v147, %v684
    %v686 = vlaneseq
    %v687 = vshrl.u32 %v686, 7
    %v688 = vsub.s32 5, %v687
    %v689 = vrot.slane %v147, %v688
    %v690 = vlaneseq
    %v691 = vshrl.u32 %v690, 7
    %v692 = vsub.s32 1, %v691
    %v693 = vrot.slane %v148, %v692
    %v694 = vlaneseq
    %v695 = vshrl.u32 %v694, 7
    %v696 = vsub.s32 5, %v695
    %v697 = vrot.slane %v148, %v696
    %v702 = vlaneseq
    %v703 = vshrl.u32 %v702, 7
    %v704 = vsub.s32 1, %v703
    %v705 = vrot.slane %v685, %v704
    %v706 = vlaneseq
    %v707 = vshrl.u32 %v706, 7
    %v708 = vsub.s32 1, %v707
    %v709 = vrot.slane %v689, %v708
    %v710 = vlaneseq
    %v711 = vshrl.u32 %v710, 7
    %v712 = vsub.s32 1, %v711
    %v713 = vrot.slane %v693, %v712
    %v714 = vlaneseq
    %v715 = vshrl.u32 %v714, 7
    %v716 = vsub.s32 1, %v715
    %v717 = vrot.slane %v697, %v716
    %v718 = vmul.f32 %v678, %v705
    %v719 = vmul.f32 %v679, %v709
    %v720 = vmul.f32 %v680, %v713
    %v721 = vmul.f32 %v681, %v717
    %v722 = vlaneseq
    %v723 = vshrl.u32 %v722, 7
    %v724 = vsub.s32 2, %v723
    %v725 = vrot.slane %v147, %v724
    %v726 = vlaneseq
    %v727 = vshrl.u32 %v726, 7
    %v728 = vsub.s32 6, %v727
    %v729 = vrot.slane %v147, %v728
    %v730 = vlaneseq
    %v731 = vshrl.u32 %v730, 7
    %v732 = vsub.s32 2, %v731
    %v733 = vrot.slane %v148, %v732
    %v734 = vlaneseq
    %v735 = vshrl.u32 %v734, 7
    %v736 = vsub.s32 6, %v735
    %v737 = vrot.slane %v148, %v736
    %v742 = vlaneseq
    %v743 = vshrl.u32 %v742, 7
    %v744 = vsub.s32 2, %v743
    %v745 = vrot.slane %v725, %v744
    %v746 = vlaneseq
    %v747 = vshrl.u32 %v746, 7
    %v748 = vsub.s32 2, %v747
    %v749 = vrot.slane %v729, %v748
    %v750 = vlaneseq
    %v751 = vshrl.u32 %v750, 7
    %v752 = vsub.s32 2, %v751
    %v753 = vrot.slane %v733, %v752
    %v754 = vlaneseq
    %v755 = vshrl.u32 %v754, 7
    %v756 = vsub.s32 2, %v755
    %v757 = vrot.slane %v737, %v756
    %v758 = vadd.f32 %v718, %v745
    %v759 = vadd.f32 %v719, %v749
    %v760 = vadd.f32 %v720, %v753
    %v761 = vadd.f32 %v721, %v757
    %v762 = vmul.f32 %v758, 0.5
    %v763 = vmul.f32 %v759, 0.5
    %v764 = vmul.f32 %v760, 0.5
    %v765 = vmul.f32 %v761, 0.5
    %v766 = vmul.f32 %v758, 0.70710677
    %v767 = vmul.f32 %v759, 0.70710677
    %v768 = vmul.f32 %v760, 0.70710677
    %v769 = vmul.f32 %v761, 0.70710677
    %v770 = verf.f32.pop %v766
    %v771 = verf.f32.pop %v767
    %v772 = verf.f32.pop %v768
    %v773 = verf.f32.pop %v769
    %v774 = vadd.f32 %v770, 1.0
    %v775 = vadd.f32 %v771, 1.0
    %v776 = vadd.f32 %v772, 1.0
    %v777 = vadd.f32 %v773, 1.0
    %v778 = vmul.f32 %v762, %v774
    %v779 = vmul.f32 %v763, %v775
    %v780 = vmul.f32 %v764, %v776
    %v781 = vmul.f32 %v765, %v777
    %v782 = vld [vmem:[#allocation8] sm:$0x77]
    %v783 = vpack.c.bf16 %v778, %v778
    %v784 = vpack.c.bf16 %v779, %v779
    %v785 = vpack.c.bf16 %v780, %v780
    %v786 = vpack.c.bf16 %v781, %v781
    %v787 = vld [vmem:[#allocation7] sm:$0xff]
    %v788 = vld [vmem:[#allocation7 + $0x8] sm:$0xff]
    %v789 = vld [vmem:[#allocation7 + $0x10] sm:$0xff]
    %v790 = vld [vmem:[#allocation7 + $0x18] sm:$0xff]
    %v791 = vld [vmem:[#allocation7 + $0x20] sm:$0xff]
    %v792 = vld [vmem:[#allocation7 + $0x28] sm:$0xff]
    %v793 = vld [vmem:[#allocation7 + $0x30] sm:$0xff]
    %v794 = vld [vmem:[#allocation7 + $0x38] sm:$0xff]
    %v795 = vld [vmem:[#allocation7 + $0x40] sm:$0xff]
    %v796 = vld [vmem:[#allocation7 + $0x48] sm:$0xff]
    %v797 = vld [vmem:[#allocation7 + $0x50] sm:$0xff]
    %v798 = vld [vmem:[#allocation7 + $0x58] sm:$0xff]
    %v799 = vld [vmem:[#allocation7 + $0x60] sm:$0xff]
    %v800 = vld [vmem:[#allocation7 + $0x68] sm:$0xff]
    %v801 = vld [vmem:[#allocation7 + $0x70] sm:$0xff]
    %v802 = vld [vmem:[#allocation7 + $0x78] sm:$0xff]
    %v803 = vld [vmem:[#allocation7 + $0x80] sm:$0xff]
    %v804 = vld [vmem:[#allocation7 + $0x88] sm:$0xff]
    %v805 = vld [vmem:[#allocation7 + $0x90] sm:$0xff]
    %v806 = vld [vmem:[#allocation7 + $0x98] sm:$0xff]
    %v807 = vld [vmem:[#allocation7 + $0xa0] sm:$0xff]
    %v808 = vld [vmem:[#allocation7 + $0xa8] sm:$0xff]
    %v809 = vld [vmem:[#allocation7 + $0xb0] sm:$0xff]
    %v810 = vld [vmem:[#allocation7 + $0xb8] sm:$0xff]
    %v811 = vld [vmem:[#allocation7 + $0xc0] sm:$0xff]
    %v812 = vld [vmem:[#allocation7 + $0xc8] sm:$0xff]
    %v813 = vld [vmem:[#allocation7 + $0xd0] sm:$0xff]
    %v814 = vld [vmem:[#allocation7 + $0xd8] sm:$0xff]
    %v815 = vld [vmem:[#allocation7 + $0xe0] sm:$0xff]
    %v816 = vld [vmem:[#allocation7 + $0xe8] sm:$0xff]
    %v817 = vld [vmem:[#allocation7 + $0xf0] sm:$0xff]
    %v818 = vld [vmem:[#allocation7 + $0xf8] sm:$0xff]
    %v819 = vld [vmem:[#allocation7 + $0x100] sm:$0xff]
    %v820 = vld [vmem:[#allocation7 + $0x108] sm:$0xff]
    %v821 = vld [vmem:[#allocation7 + $0x110] sm:$0xff]
    %v822 = vld [vmem:[#allocation7 + $0x118] sm:$0xff]
    %v823 = vld [vmem:[#allocation7 + $0x120] sm:$0xff]
    %v824 = vld [vmem:[#allocation7 + $0x128] sm:$0xff]
    %v825 = vld [vmem:[#allocation7 + $0x130] sm:$0xff]
    %v826 = vld [vmem:[#allocation7 + $0x138] sm:$0xff]
    %v827 = vld [vmem:[#allocation7 + $0x140] sm:$0xff]
    %v828 = vld [vmem:[#allocation7 + $0x148] sm:$0xff]
    %v829 = vld [vmem:[#allocation7 + $0x150] sm:$0xff]
    %v830 = vld [vmem:[#allocation7 + $0x158] sm:$0xff]
    %v831 = vld [vmem:[#allocation7 + $0x160] sm:$0xff]
    %v832 = vld [vmem:[#allocation7 + $0x168] sm:$0xff]
    %v833 = vld [vmem:[#allocation7 + $0x170] sm:$0xff]
    %v834 = vld [vmem:[#allocation7 + $0x178] sm:$0xff]
    %v835 = vld [vmem:[#allocation7 + $0x180] sm:$0xff]
    %v836 = vld [vmem:[#allocation7 + $0x188] sm:$0xff]
    %v837 = vld [vmem:[#allocation7 + $0x190] sm:$0xff]
    %v838 = vld [vmem:[#allocation7 + $0x198] sm:$0xff]
    %v839 = vld [vmem:[#allocation7 + $0x1a0] sm:$0xff]
    %v840 = vld [vmem:[#allocation7 + $0x1a8] sm:$0xff]
    %v841 = vld [vmem:[#allocation7 + $0x1b0] sm:$0xff]
    %v842 = vld [vmem:[#allocation7 + $0x1b8] sm:$0xff]
    %v843 = vld [vmem:[#allocation7 + $0x1c0] sm:$0xff]
    %v844 = vld [vmem:[#allocation7 + $0x1c8] sm:$0xff]
    %v845 = vld [vmem:[#allocation7 + $0x1d0] sm:$0xff]
    %v846 = vld [vmem:[#allocation7 + $0x1d8] sm:$0xff]
    %v847 = vld [vmem:[#allocation7 + $0x1e0] sm:$0xff]
    %v848 = vld [vmem:[#allocation7 + $0x1e8] sm:$0xff]
    %v849 = vld [vmem:[#allocation7 + $0x1f0] sm:$0xff]
    %v850 = vld [vmem:[#allocation7 + $0x1f8] sm:$0xff]
    %v852 = vlaneseq
    %v853 = vshrl.u32 %v852, 7
    %v854 = vsub.s32 0, %v853
    %v855 = vrot.slane %v782, %v854
    %v856 = vlaneseq
    %v857 = vshrl.u32 %v856, 7
    %v858 = vsub.s32 4, %v857
    %v859 = vrot.slane %v782, %v858
    %v862 = vlaneseq
    %v863 = vshrl.u32 %v862, 7
    %v864 = vsub.s32 0, %v863
    %v865 = vrot.slane %v855, %v864
    %v866 = vlaneseq
    %v867 = vshrl.u32 %v866, 7
    %v868 = vsub.s32 0, %v867
    %v869 = vrot.slane %v859, %v868
    %v934 = vunpack.c.l.b16 %v787
    %v935 = vunpack.c.h.b16 %v787
    %v936 = vunpack.c.l.b16 %v788
    %v937 = vunpack.c.h.b16 %v788
    %v938 = vunpack.c.l.b16 %v789
    %v939 = vunpack.c.h.b16 %v789
    %v940 = vunpack.c.l.b16 %v790
    %v941 = vunpack.c.h.b16 %v790
    %v942 = vunpack.c.l.b16 %v791
    %v943 = vunpack.c.h.b16 %v791
    %v944 = vunpack.c.l.b16 %v792
    %v945 = vunpack.c.h.b16 %v792
    %v946 = vunpack.c.l.b16 %v793
    %v947 = vunpack.c.h.b16 %v793
    %v948 = vunpack.c.l.b16 %v794
    %v949 = vunpack.c.h.b16 %v794
    %v950 = vunpack.c.l.b16 %v795
    %v951 = vunpack.c.h.b16 %v795
    %v952 = vunpack.c.l.b16 %v796
    %v953 = vunpack.c.h.b16 %v796
    %v954 = vunpack.c.l.b16 %v797
    %v955 = vunpack.c.h.b16 %v797
    %v956 = vunpack.c.l.b16 %v798
    %v957 = vunpack.c.h.b16 %v798
    %v958 = vunpack.c.l.b16 %v799
    %v959 = vunpack.c.h.b16 %v799
    %v960 = vunpack.c.l.b16 %v800
    %v961 = vunpack.c.h.b16 %v800
    %v962 = vunpack.c.l.b16 %v801
    %v963 = vunpack.c.h.b16 %v801
    %v964 = vunpack.c.l.b16 %v802
    %v965 = vunpack.c.h.b16 %v802
    %v966 = vunpack.c.l.b16 %v803
    %v967 = vunpack.c.h.b16 %v803
    %v968 = vunpack.c.l.b16 %v804
    %v969 = vunpack.c.h.b16 %v804
    %v970 = vunpack.c.l.b16 %v805
    %v971 = vunpack.c.h.b16 %v805
    %v972 = vunpack.c.l.b16 %v806
    %v973 = vunpack.c.h.b16 %v806
    %v974 = vunpack.c.l.b16 %v807
    %v975 = vunpack.c.h.b16 %v807
    %v976 = vunpack.c.l.b16 %v808
    %v977 = vunpack.c.h.b16 %v808
    %v978 = vunpack.c.l.b16 %v809
    %v979 = vunpack.c.h.b16 %v809
    %v980 = vunpack.c.l.b16 %v810
    %v981 = vunpack.c.h.b16 %v810
    %v982 = vunpack.c.l.b16 %v811
    %v983 = vunpack.c.h.b16 %v811
    %v984 = vunpack.c.l.b16 %v812
    %v985 = vunpack.c.h.b16 %v812
    %v986 = vunpack.c.l.b16 %v813
    %v987 = vunpack.c.h.b16 %v813
    %v988 = vunpack.c.l.b16 %v814
    %v989 = vunpack.c.h.b16 %v814
    %v990 = vunpack.c.l.b16 %v815
    %v991 = vunpack.c.h.b16 %v815
    %v992 = vunpack.c.l.b16 %v816
    %v993 = vunpack.c.h.b16 %v816
    %v994 = vunpack.c.l.b16 %v817
    %v995 = vunpack.c.h.b16 %v817
    %v996 = vunpack.c.l.b16 %v818
    %v997 = vunpack.c.h.b16 %v818
    %v998 = vunpack.c.l.b16 %v819
    %v999 = vunpack.c.h.b16 %v819
    %v1000 = vunpack.c.l.b16 %v820
    %v1001 = vunpack.c.h.b16 %v820
    %v1002 = vunpack.c.l.b16 %v821
    %v1003 = vunpack.c.h.b16 %v821
    %v1004 = vunpack.c.l.b16 %v822
    %v1005 = vunpack.c.h.b16 %v822
    %v1006 = vunpack.c.l.b16 %v823
    %v1007 = vunpack.c.h.b16 %v823
    %v1008 = vunpack.c.l.b16 %v824
    %v1009 = vunpack.c.h.b16 %v824
    %v1010 = vunpack.c.l.b16 %v825
    %v1011 = vunpack.c.h.b16 %v825
    %v1012 = vunpack.c.l.b16 %v826
    %v1013 = vunpack.c.h.b16 %v826
    %v1014 = vunpack.c.l.b16 %v827
    %v1015 = vunpack.c.h.b16 %v827
    %v1016 = vunpack.c.l.b16 %v828
    %v1017 = vunpack.c.h.b16 %v828
    %v1018 = vunpack.c.l.b16 %v829
    %v1019 = vunpack.c.h.b16 %v829
    %v1020 = vunpack.c.l.b16 %v830
    %v1021 = vunpack.c.h.b16 %v830
    %v1022 = vunpack.c.l.b16 %v831
    %v1023 = vunpack.c.h.b16 %v831
    %v1024 = vunpack.c.l.b16 %v832
    %v1025 = vunpack.c.h.b16 %v832
    %v1026 = vunpack.c.l.b16 %v833
    %v1027 = vunpack.c.h.b16 %v833
    %v1028 = vunpack.c.l.b16 %v834
    %v1029 = vunpack.c.h.b16 %v834
    %v1030 = vunpack.c.l.b16 %v835
    %v1031 = vunpack.c.h.b16 %v835
    %v1032 = vunpack.c.l.b16 %v836
    %v1033 = vunpack.c.h.b16 %v836
    %v1034 = vunpack.c.l.b16 %v837
    %v1035 = vunpack.c.h.b16 %v837
    %v1036 = vunpack.c.l.b16 %v838
    %v1037 = vunpack.c.h.b16 %v838
    %v1038 = vunpack.c.l.b16 %v839
    %v1039 = vunpack.c.h.b16 %v839
    %v1040 = vunpack.c.l.b16 %v840
    %v1041 = vunpack.c.h.b16 %v840
    %v1042 = vunpack.c.l.b16 %v841
    %v1043 = vunpack.c.h.b16 %v841
    %v1044 = vunpack.c.l.b16 %v842
    %v1045 = vunpack.c.h.b16 %v842
    %v1046 = vunpack.c.l.b16 %v843
    %v1047 = vunpack.c.h.b16 %v843
    %v1048 = vunpack.c.l.b16 %v844
    %v1049 = vunpack.c.h.b16 %v844
    %v1050 = vunpack.c.l.b16 %v845
    %v1051 = vunpack.c.h.b16 %v845
    %v1052 = vunpack.c.l.b16 %v846
    %v1053 = vunpack.c.h.b16 %v846
    %v1054 = vunpack.c.l.b16 %v847
    %v1055 = vunpack.c.h.b16 %v847
    %v1056 = vunpack.c.l.b16 %v848
    %v1057 = vunpack.c.h.b16 %v848
    %v1058 = vunpack.c.l.b16 %v849
    %v1059 = vunpack.c.h.b16 %v849
    %v1060 = vunpack.c.l.b16 %v850
    %v1061 = vunpack.c.h.b16 %v850
    %v1062 = vpack.c.b16 %v936, %v934
    %v1063 = vpack.c.b16 %v937, %v935
    %v1064 = vpack.c.b16 %v940, %v938
    %v1065 = vpack.c.b16 %v941, %v939
    %v1066 = vpack.c.b16 %v944, %v942
    %v1067 = vpack.c.b16 %v945, %v943
    %v1068 = vpack.c.b16 %v948, %v946
    %v1069 = vpack.c.b16 %v949, %v947
    %v1070 = vpack.c.b16 %v952, %v950
    %v1071 = vpack.c.b16 %v953, %v951
    %v1072 = vpack.c.b16 %v956, %v954
    %v1073 = vpack.c.b16 %v957, %v955
    %v1074 = vpack.c.b16 %v960, %v958
    %v1075 = vpack.c.b16 %v961, %v959
    %v1076 = vpack.c.b16 %v964, %v962
    %v1077 = vpack.c.b16 %v965, %v963
    %v1078 = vpack.c.b16 %v968, %v966
    %v1079 = vpack.c.b16 %v969, %v967
    %v1080 = vpack.c.b16 %v972, %v970
    %v1081 = vpack.c.b16 %v973, %v971
    %v1082 = vpack.c.b16 %v976, %v974
    %v1083 = vpack.c.b16 %v977, %v975
    %v1084 = vpack.c.b16 %v980, %v978
    %v1085 = vpack.c.b16 %v981, %v979
    %v1086 = vpack.c.b16 %v984, %v982
    %v1087 = vpack.c.b16 %v985, %v983
    %v1088 = vpack.c.b16 %v988, %v986
    %v1089 = vpack.c.b16 %v989, %v987
    %v1090 = vpack.c.b16 %v992, %v990
    %v1091 = vpack.c.b16 %v993, %v991
    %v1092 = vpack.c.b16 %v996, %v994
    %v1093 = vpack.c.b16 %v997, %v995
    %v1094 = vpack.c.b16 %v1000, %v998
    %v1095 = vpack.c.b16 %v1001, %v999
    %v1096 = vpack.c.b16 %v1004, %v1002
    %v1097 = vpack.c.b16 %v1005, %v1003
    %v1098 = vpack.c.b16 %v1008, %v1006
    %v1099 = vpack.c.b16 %v1009, %v1007
    %v1100 = vpack.c.b16 %v1012, %v1010
    %v1101 = vpack.c.b16 %v1013, %v1011
    %v1102 = vpack.c.b16 %v1016, %v1014
    %v1103 = vpack.c.b16 %v1017, %v1015
    %v1104 = vpack.c.b16 %v1020, %v1018
    %v1105 = vpack.c.b16 %v1021, %v1019
    %v1106 = vpack.c.b16 %v1024, %v1022
    %v1107 = vpack.c.b16 %v1025, %v1023
    %v1108 = vpack.c.b16 %v1028, %v1026
    %v1109 = vpack.c.b16 %v1029, %v1027
    %v1110 = vpack.c.b16 %v1032, %v1030
    %v1111 = vpack.c.b16 %v1033, %v1031
    %v1112 = vpack.c.b16 %v1036, %v1034
    %v1113 = vpack.c.b16 %v1037, %v1035
    %v1114 = vpack.c.b16 %v1040, %v1038
    %v1115 = vpack.c.b16 %v1041, %v1039
    %v1116 = vpack.c.b16 %v1044, %v1042
    %v1117 = vpack.c.b16 %v1045, %v1043
    %v1118 = vpack.c.b16 %v1048, %v1046
    %v1119 = vpack.c.b16 %v1049, %v1047
    %v1120 = vpack.c.b16 %v1052, %v1050
    %v1121 = vpack.c.b16 %v1053, %v1051
    %v1122 = vpack.c.b16 %v1056, %v1054
    %v1123 = vpack.c.b16 %v1057, %v1055
    %v1124 = vpack.c.b16 %v1060, %v1058
    %v1125 = vpack.c.b16 %v1061, %v1059
    %1190 = vmatprep.subr.bf16.mxu0 %v1077
    %1191 = vmatpush1.bf16.msra.mxu0 %v1076
    %1192 = vmatprep.subr.bf16.mxu0 %v1075
    %1193 = vmatpush1.bf16.msra.mxu0 %v1074
    %1194 = vmatprep.subr.bf16.mxu0 %v1073
    %1195 = vmatpush1.bf16.msra.mxu0 %v1072
    %1196 = vmatprep.subr.bf16.mxu0 %v1071
    %1197 = vmatpush1.bf16.msra.mxu0 %v1070
    %1198 = vmatprep.subr.bf16.mxu0 %v1069
    %1199 = vmatpush1.bf16.msra.mxu0 %v1068
    %1200 = vmatprep.subr.bf16.mxu0 %v1067
    %1201 = vmatpush1.bf16.msra.mxu0 %v1066
    %1202 = vmatprep.subr.bf16.mxu0 %v1065
    %1203 = vmatpush1.bf16.msra.mxu0 %v1064
    %1204 = vmatprep.subr.bf16.mxu0 %v1063
    %1205 = vmatpush1.bf16.msra.mxu0 %v1062
    %1206 = vmatprep.subr.bf16.mxu0 %v1093
    %1207 = vmatpush2.bf16.msra.mxu0 %v1092
    %1208 = vmatprep.subr.bf16.mxu0 %v1091
    %1209 = vmatpush2.bf16.msra.mxu0 %v1090
    %1210 = vmatprep.subr.bf16.mxu0 %v1089
    %1211 = vmatpush2.bf16.msra.mxu0 %v1088
    %1212 = vmatprep.subr.bf16.mxu0 %v1087
    %1213 = vmatpush2.bf16.msra.mxu0 %v1086
    %1214 = vmatprep.subr.bf16.mxu0 %v1085
    %1215 = vmatpush2.bf16.msra.mxu0 %v1084
    %1216 = vmatprep.subr.bf16.mxu0 %v1083
    %1217 = vmatpush2.bf16.msra.mxu0 %v1082
    %1218 = vmatprep.subr.bf16.mxu0 %v1081
    %1219 = vmatpush2.bf16.msra.mxu0 %v1080
    %1220 = vmatprep.subr.bf16.mxu0 %v1079
    %1221 = vmatpush2.bf16.msra.mxu0 %v1078
    %1222 = vmatprep.mubr.bf16.mxu0 %v784
    %1223 = vmatmul.mubr.bf16.gmra.mxu0 %v783
    %v1224 = vpop.f32.mrf.mxu0
    %v1225 = vadd.f32 %v865, %v1224
    %v1226 = vpop.f32.mrf.mxu0
    %v1227 = vadd.f32 %v869, %v1226
    %v1228 = vpop.f32.mrf.mxu0
    %v1229 = vpop.f32.mrf.mxu0
    %1230 = vdwg.mxu0
    %1231 = vmatprep.subr.bf16.mxu0 %v1109
    %1232 = vmatpush1.bf16.msra.mxu0 %v1108
    %1233 = vmatprep.subr.bf16.mxu0 %v1107
    %1234 = vmatpush1.bf16.msra.mxu0 %v1106
    %1235 = vmatprep.subr.bf16.mxu0 %v1105
    %1236 = vmatpush1.bf16.msra.mxu0 %v1104
    %1237 = vmatprep.subr.bf16.mxu0 %v1103
    %1238 = vmatpush1.bf16.msra.mxu0 %v1102
    %1239 = vmatprep.subr.bf16.mxu0 %v1101
    %1240 = vmatpush1.bf16.msra.mxu0 %v1100
    %1241 = vmatprep.subr.bf16.mxu0 %v1099
    %1242 = vmatpush1.bf16.msra.mxu0 %v1098
    %1243 = vmatprep.subr.bf16.mxu0 %v1097
    %1244 = vmatpush1.bf16.msra.mxu0 %v1096
    %1245 = vmatprep.subr.bf16.mxu0 %v1095
    %1246 = vmatpush1.bf16.msra.mxu0 %v1094
    %1247 = vmatprep.subr.bf16.mxu0 %v1125
    %1248 = vmatpush2.bf16.msra.mxu0 %v1124
    %1249 = vmatprep.subr.bf16.mxu0 %v1123
    %1250 = vmatpush2.bf16.msra.mxu0 %v1122
    %1251 = vmatprep.subr.bf16.mxu0 %v1121
    %1252 = vmatpush2.bf16.msra.mxu0 %v1120
    %1253 = vmatprep.subr.bf16.mxu0 %v1119
    %1254 = vmatpush2.bf16.msra.mxu0 %v1118
    %1255 = vmatprep.subr.bf16.mxu0 %v1117
    %1256 = vmatpush2.bf16.msra.mxu0 %v1116
    %1257 = vmatprep.subr.bf16.mxu0 %v1115
    %1258 = vmatpush2.bf16.msra.mxu0 %v1114
    %1259 = vmatprep.subr.bf16.mxu0 %v1113
    %1260 = vmatpush2.bf16.msra.mxu0 %v1112
    %1261 = vmatprep.subr.bf16.mxu0 %v1111
    %1262 = vmatpush2.bf16.msra.mxu0 %v1110
    %1263 = vmatprep.mubr.bf16.mxu0 %v786
    %1264 = vmatmul.mubr.bf16.gmra.mxu0 %v785
    %v1265 = vpop.f32.mrf.mxu0
    %v1266 = vadd.f32 %v1225, %v1265
    %v1267 = vpop.f32.mrf.mxu0
    %v1268 = vadd.f32 %v1227, %v1267
    %v1269 = vpop.f32.mrf.mxu0
    %v1270 = vpop.f32.mrf.mxu0
    %1271 = vdwg.mxu0
    %v1272 = vadd.f32 %v1266, %v1268
    %1273 = vadd.xlane.f32.xlu0 %v1272
    %v1274 = vpop.xlane.xlu0 %1273
    %v1275 = vrcp.pop 256.0
    %v1276 = vmul.f32 %v1274, %v1275
    %v1277 = vsub.f32 %v1266, %v1276
    %v1278 = vsub.f32 %v1268, %v1276
    %v1279 = vmul.f32 %v1277, %v1277
    %v1280 = vmul.f32 %v1278, %v1278
    %v1281 = vadd.f32 %v1279, %v1280
    %1282 = vadd.xlane.f32.xlu0 %v1281
    %v1283 = vpop.xlane.xlu0 %1282
    %v1284 = vmul.f32 %v1283, %v1275
    %v1285 = vadd.f32 %v1284, 1e-05
    %v1286 = vrsqrt.pop %v1285
    %v1287 = vmul.f32 %v1277, %v1286
    %v1288 = vmul.f32 %v1278, %v1286
    %v1289 = vlaneseq
    %v1290 = vshrl.u32 %v1289, 7
    %v1291 = vsub.s32 1, %v1290
    %v1292 = vrot.slane %v782, %v1291
    %v1293 = vlaneseq
    %v1294 = vshrl.u32 %v1293, 7
    %v1295 = vsub.s32 5, %v1294
    %v1296 = vrot.slane %v782, %v1295
    %v1299 = vlaneseq
    %v1300 = vshrl.u32 %v1299, 7
    %v1301 = vsub.s32 1, %v1300
    %v1302 = vrot.slane %v1292, %v1301
    %v1303 = vlaneseq
    %v1304 = vshrl.u32 %v1303, 7
    %v1305 = vsub.s32 1, %v1304
    %v1306 = vrot.slane %v1296, %v1305
    %v1307 = vmul.f32 %v1287, %v1302
    %v1308 = vmul.f32 %v1288, %v1306
    %v1309 = vlaneseq
    %v1310 = vshrl.u32 %v1309, 7
    %v1311 = vsub.s32 2, %v1310
    %v1312 = vrot.slane %v782, %v1311
    %v1313 = vlaneseq
    %v1314 = vshrl.u32 %v1313, 7
    %v1315 = vsub.s32 6, %v1314
    %v1316 = vrot.slane %v782, %v1315
    %v1319 = vlaneseq
    %v1320 = vshrl.u32 %v1319, 7
    %v1321 = vsub.s32 2, %v1320
    %v1322 = vrot.slane %v1312, %v1321
    %v1323 = vlaneseq
    %v1324 = vshrl.u32 %v1323, 7
    %v1325 = vsub.s32 2, %v1324
    %v1326 = vrot.slane %v1316, %v1325
    %v1327 = vadd.f32 %v1307, %v1322
    %v1328 = vadd.f32 %v1308, %v1326
    %v1329 = vmul.f32 %v1327, 0.5
    %v1330 = vmul.f32 %v1328, 0.5
    %v1331 = vmul.f32 %v1327, 0.70710677
    %v1332 = vmul.f32 %v1328, 0.70710677
    %v1333 = verf.f32.pop %v1331
    %v1334 = verf.f32.pop %v1332
    %v1335 = vadd.f32 %v1333, 1.0
    %v1336 = vadd.f32 %v1334, 1.0
    %v1337 = vmul.f32 %v1329, %v1335
    %v1338 = vmul.f32 %v1330, %v1336
    %v1339 = vld [vmem:[#allocation10] sm:$0x7]
    %v1340 = vpack.c.bf16 %v1337, %v1337
    %v1341 = vpack.c.bf16 %v1338, %v1338
    %v1342 = vld [vmem:[%s5] sm:$0xf]
    %v1343 = vld [vmem:[%s5 + $0x4] sm:$0xf]
    %v1344 = vld [vmem:[%s5 + $0x8] sm:$0xf]
    %v1345 = vld [vmem:[%s5 + $0xc] sm:$0xf]
    %v1346 = vld [vmem:[%s5 + $0x10] sm:$0xf]
    %v1347 = vld [vmem:[%s5 + $0x14] sm:$0xf]
    %v1348 = vld [vmem:[%s5 + $0x18] sm:$0xf]
    %v1349 = vld [vmem:[%s5 + $0x1c] sm:$0xf]
    %v1350 = vld [vmem:[%s5 + $0x20] sm:$0xf]
    %v1351 = vld [vmem:[%s5 + $0x24] sm:$0xf]
    %v1352 = vld [vmem:[%s5 + $0x28] sm:$0xf]
    %v1353 = vld [vmem:[%s5 + $0x2c] sm:$0xf]
    %v1354 = vld [vmem:[%s5 + $0x30] sm:$0xf]
    %v1355 = vld [vmem:[%s5 + $0x34] sm:$0xf]
    %v1356 = vld [vmem:[%s5 + $0x38] sm:$0xf]
    %v1357 = vld [vmem:[%s5 + $0x3c] sm:$0xf]
    %v1358 = vld [vmem:[%s5 + $0x40] sm:$0xf]
    %v1359 = vld [vmem:[%s5 + $0x44] sm:$0xf]
    %v1360 = vld [vmem:[%s5 + $0x48] sm:$0xf]
    %v1361 = vld [vmem:[%s5 + $0x4c] sm:$0xf]
    %v1362 = vld [vmem:[%s5 + $0x50] sm:$0xf]
    %v1363 = vld [vmem:[%s5 + $0x54] sm:$0xf]
    %v1364 = vld [vmem:[%s5 + $0x58] sm:$0xf]
    %v1365 = vld [vmem:[%s5 + $0x5c] sm:$0xf]
    %v1366 = vld [vmem:[%s5 + $0x60] sm:$0xf]
    %v1367 = vld [vmem:[%s5 + $0x64] sm:$0xf]
    %v1368 = vld [vmem:[%s5 + $0x68] sm:$0xf]
    %v1369 = vld [vmem:[%s5 + $0x6c] sm:$0xf]
    %v1370 = vld [vmem:[%s5 + $0x70] sm:$0xf]
    %v1371 = vld [vmem:[%s5 + $0x74] sm:$0xf]
    %v1372 = vld [vmem:[%s5 + $0x78] sm:$0xf]
    %v1373 = vld [vmem:[%s5 + $0x7c] sm:$0xf]
    %v1374 = vlaneseq
    %v1375 = vshrl.u32 %v1374, 7
    %v1376 = vsub.s32 0, %v1375
    %v1377 = vrot.slane %v1339, %v1376
    %v1410 = vunpack.c.l.b16 %v1342
    %v1411 = vunpack.c.l.b16 %v1343
    %v1412 = vunpack.c.l.b16 %v1344
    %v1413 = vunpack.c.l.b16 %v1345
    %v1414 = vunpack.c.l.b16 %v1346
    %v1415 = vunpack.c.l.b16 %v1347
    %v1416 = vunpack.c.l.b16 %v1348
    %v1417 = vunpack.c.l.b16 %v1349
    %v1418 = vunpack.c.l.b16 %v1350
    %v1419 = vunpack.c.l.b16 %v1351
    %v1420 = vunpack.c.l.b16 %v1352
    %v1421 = vunpack.c.l.b16 %v1353
    %v1422 = vunpack.c.l.b16 %v1354
    %v1423 = vunpack.c.l.b16 %v1355
    %v1424 = vunpack.c.l.b16 %v1356
    %v1425 = vunpack.c.l.b16 %v1357
    %v1426 = vunpack.c.l.b16 %v1358
    %v1427 = vunpack.c.l.b16 %v1359
    %v1428 = vunpack.c.l.b16 %v1360
    %v1429 = vunpack.c.l.b16 %v1361
    %v1430 = vunpack.c.l.b16 %v1362
    %v1431 = vunpack.c.l.b16 %v1363
    %v1432 = vunpack.c.l.b16 %v1364
    %v1433 = vunpack.c.l.b16 %v1365
    %v1434 = vunpack.c.l.b16 %v1366
    %v1435 = vunpack.c.l.b16 %v1367
    %v1436 = vunpack.c.l.b16 %v1368
    %v1437 = vunpack.c.l.b16 %v1369
    %v1438 = vunpack.c.l.b16 %v1370
    %v1439 = vunpack.c.l.b16 %v1371
    %v1440 = vunpack.c.l.b16 %v1372
    %v1441 = vunpack.c.l.b16 %v1373
    %v1442 = vpack.c.b16 %v1411, %v1410
    %v1443 = vpack.c.b16 %v1413, %v1412
    %v1444 = vpack.c.b16 %v1415, %v1414
    %v1445 = vpack.c.b16 %v1417, %v1416
    %v1446 = vpack.c.b16 %v1419, %v1418
    %v1447 = vpack.c.b16 %v1421, %v1420
    %v1448 = vpack.c.b16 %v1423, %v1422
    %v1449 = vpack.c.b16 %v1425, %v1424
    %v1450 = vpack.c.b16 %v1427, %v1426
    %v1451 = vpack.c.b16 %v1429, %v1428
    %v1452 = vpack.c.b16 %v1431, %v1430
    %v1453 = vpack.c.b16 %v1433, %v1432
    %v1454 = vpack.c.b16 %v1435, %v1434
    %v1455 = vpack.c.b16 %v1437, %v1436
    %v1456 = vpack.c.b16 %v1439, %v1438
    %v1457 = vpack.c.b16 %v1441, %v1440
    %1474 = vmatprep.subr.bf16.mxu0 0
    %1475 = vmatpush1.bf16.msra.mxu0 %v1449
    %1476 = vmatprep.subr.bf16.mxu0 0
    %1477 = vmatpush1.bf16.msra.mxu0 %v1448
    %1478 = vmatprep.subr.bf16.mxu0 0
    %1479 = vmatpush1.bf16.msra.mxu0 %v1447
    %1480 = vmatprep.subr.bf16.mxu0 0
    %1481 = vmatpush1.bf16.msra.mxu0 %v1446
    %1482 = vmatprep.subr.bf16.mxu0 0
    %1483 = vmatpush1.bf16.msra.mxu0 %v1445
    %1484 = vmatprep.subr.bf16.mxu0 0
    %1485 = vmatpush1.bf16.msra.mxu0 %v1444
    %1486 = vmatprep.subr.bf16.mxu0 0
    %1487 = vmatpush1.bf16.msra.mxu0 %v1443
    %1488 = vmatprep.subr.bf16.mxu0 0
    %1489 = vmatpush1.bf16.msra.mxu0 %v1442
    %1490 = vmatprep.subr.bf16.mxu0 0
    %1491 = vmatpush2.bf16.msra.mxu0 %v1457
    %1492 = vmatprep.subr.bf16.mxu0 0
    %1493 = vmatpush2.bf16.msra.mxu0 %v1456
    %1494 = vmatprep.subr.bf16.mxu0 0
    %1495 = vmatpush2.bf16.msra.mxu0 %v1455
    %1496 = vmatprep.subr.bf16.mxu0 0
    %1497 = vmatpush2.bf16.msra.mxu0 %v1454
    %1498 = vmatprep.subr.bf16.mxu0 0
    %1499 = vmatpush2.bf16.msra.mxu0 %v1453
    %1500 = vmatprep.subr.bf16.mxu0 0
    %1501 = vmatpush2.bf16.msra.mxu0 %v1452
    %1502 = vmatprep.subr.bf16.mxu0 0
    %1503 = vmatpush2.bf16.msra.mxu0 %v1451
    %1504 = vmatprep.subr.bf16.mxu0 0
    %1505 = vmatpush2.bf16.msra.mxu0 %v1450
    %1506 = vmatprep.mubr.bf16.mxu0 %v1341
    %1507 = vmatmul.mubr.bf16.gmra.mxu0 %v1340
    %v1508 = vpop.f32.mrf.mxu0
    %v1509 = vadd.f32 %v1377, %v1508
    %v1510 = vpop.f32.mrf.mxu0
    %v1511 = vpop.f32.mrf.mxu0
    %v1512 = vpop.f32.mrf.mxu0
    %1513 = vdwg.mxu0
    %1514 = vadd.xlane.f32.xlu0 %v1509
    %v1515 = vpop.xlane.xlu0 %1514
    %v1516 = vrcp.pop 128.0
    %v1517 = vmul.f32 %v1515, %v1516
    %v1518 = vsub.f32 %v1509, %v1517
    %v1519 = vmul.f32 %v1518, %v1518
    %1520 = vadd.xlane.f32.xlu0 %v1519
    %v1521 = vpop.xlane.xlu0 %1520
    %v1522 = vmul.f32 %v1521, %v1516
    %v1523 = vadd.f32 %v1522, 1e-05
    %v1524 = vrsqrt.pop %v1523
    %v1525 = vmul.f32 %v1518, %v1524
    %v1526 = vlaneseq
    %v1527 = vshrl.u32 %v1526, 7
    %v1528 = vsub.s32 1, %v1527
    %v1529 = vrot.slane %v1339, %v1528
    %v1530 = vmul.f32 %v1525, %v1529
    %v1531 = vlaneseq
    %v1532 = vshrl.u32 %v1531, 7
    %v1533 = vsub.s32 2, %v1532
    %v1534 = vrot.slane %v1339, %v1533
    %v1535 = vadd.f32 %v1530, %v1534
    %v1536 = vmul.f32 %v1535, 0.5
    %v1537 = vmul.f32 %v1535, 0.70710677
    %v1538 = verf.f32.pop %v1537
    %v1539 = vadd.f32 %v1538, 1.0
    %v1540 = vmul.f32 %v1536, %v1539
    %v1541 = vld [vmem:[#allocation11] sm:$0x7]
    %v1542 = vpack.c.bf16 %v1540, %v1540
    %v1543 = vld [vmem:[%s7] sm:$0xf]
    %v1544 = vld [vmem:[%s7 + $0x4] sm:$0xf]
    %v1545 = vld [vmem:[%s7 + $0x8] sm:$0xf]
    %v1546 = vld [vmem:[%s7 + $0xc] sm:$0xf]
    %v1547 = vld [vmem:[%s7 + $0x10] sm:$0xf]
    %v1548 = vld [vmem:[%s7 + $0x14] sm:$0xf]
    %v1549 = vld [vmem:[%s7 + $0x18] sm:$0xf]
    %v1550 = vld [vmem:[%s7 + $0x1c] sm:$0xf]
    %v1551 = vld [vmem:[%s7 + $0x20] sm:$0xf]
    %v1552 = vld [vmem:[%s7 + $0x24] sm:$0xf]
    %v1553 = vld [vmem:[%s7 + $0x28] sm:$0xf]
    %v1554 = vld [vmem:[%s7 + $0x2c] sm:$0xf]
    %v1555 = vld [vmem:[%s7 + $0x30] sm:$0xf]
    %v1556 = vld [vmem:[%s7 + $0x34] sm:$0xf]
    %v1557 = vld [vmem:[%s7 + $0x38] sm:$0xf]
    %v1558 = vld [vmem:[%s7 + $0x3c] sm:$0xf]
    %v1559 = vlaneseq
    %v1560 = vshrl.u32 %v1559, 7
    %v1561 = vsub.s32 0, %v1560
    %v1562 = vrot.slane %v1541, %v1561
    %v1579 = vunpack.c.l.b16 %v1543
    %v1580 = vunpack.c.l.b16 %v1544
    %v1581 = vunpack.c.l.b16 %v1545
    %v1582 = vunpack.c.l.b16 %v1546
    %v1583 = vunpack.c.l.b16 %v1547
    %v1584 = vunpack.c.l.b16 %v1548
    %v1585 = vunpack.c.l.b16 %v1549
    %v1586 = vunpack.c.l.b16 %v1550
    %v1587 = vunpack.c.l.b16 %v1551
    %v1588 = vunpack.c.l.b16 %v1552
    %v1589 = vunpack.c.l.b16 %v1553
    %v1590 = vunpack.c.l.b16 %v1554
    %v1591 = vunpack.c.l.b16 %v1555
    %v1592 = vunpack.c.l.b16 %v1556
    %v1593 = vunpack.c.l.b16 %v1557
    %v1594 = vunpack.c.l.b16 %v1558
    %v1595 = vpack.c.b16 %v1580, %v1579
    %v1596 = vpack.c.b16 %v1582, %v1581
    %v1597 = vpack.c.b16 %v1584, %v1583
    %v1598 = vpack.c.b16 %v1586, %v1585
    %v1599 = vpack.c.b16 %v1588, %v1587
    %v1600 = vpack.c.b16 %v1590, %v1589
    %v1601 = vpack.c.b16 %v1592, %v1591
    %v1602 = vpack.c.b16 %v1594, %v1593
    %1611 = vmatprep.subr.bf16.mxu0 0
    %1612 = vmatpush1.bf16.msra.mxu0 %v1602
    %1613 = vmatprep.subr.bf16.mxu0 0
    %1614 = vmatpush1.bf16.msra.mxu0 %v1601
    %1615 = vmatprep.subr.bf16.mxu0 0
    %1616 = vmatpush1.bf16.msra.mxu0 %v1600
    %1617 = vmatprep.subr.bf16.mxu0 0
    %1618 = vmatpush1.bf16.msra.mxu0 %v1599
    %1619 = vmatprep.subr.bf16.mxu0 0
    %1620 = vmatpush1.bf16.msra.mxu0 %v1598
    %1621 = vmatprep.subr.bf16.mxu0 0
    %1622 = vmatpush1.bf16.msra.mxu0 %v1597
    %1623 = vmatprep.subr.bf16.mxu0 0
    %1624 = vmatpush1.bf16.msra.mxu0 %v1596
    %1625 = vmatprep.subr.bf16.mxu0 0
    %1626 = vmatpush1.bf16.msra.mxu0 %v1595
    %1627 = vmatprep.subr.bf16.mxu0 0
    %1628 = vmatpush2.bf16.msra.mxu0 0
    %1629 = vmatprep.subr.bf16.mxu0 0
    %1630 = vmatpush2.bf16.msra.mxu0 0
    %1631 = vmatprep.subr.bf16.mxu0 0
    %1632 = vmatpush2.bf16.msra.mxu0 0
    %1633 = vmatprep.subr.bf16.mxu0 0
    %1634 = vmatpush2.bf16.msra.mxu0 0
    %1635 = vmatprep.subr.bf16.mxu0 0
    %1636 = vmatpush2.bf16.msra.mxu0 0
    %1637 = vmatprep.subr.bf16.mxu0 0
    %1638 = vmatpush2.bf16.msra.mxu0 0
    %1639 = vmatprep.subr.bf16.mxu0 0
    %1640 = vmatpush2.bf16.msra.mxu0 0
    %1641 = vmatprep.subr.bf16.mxu0 0
    %1642 = vmatpush2.bf16.msra.mxu0 0
    %1643 = vmatprep.mubr.bf16.mxu0 0
    %1644 = vmatmul.mubr.bf16.gmra.mxu0 %v1542
    %v1645 = vpop.f32.mrf.mxu0
    %v1646 = vadd.f32 %v1562, %v1645
    %v1647 = vpop.f32.mrf.mxu0
    %v1648 = vpop.f32.mrf.mxu0
    %v1649 = vpop.f32.mrf.mxu0
    %1650 = vdwg.mxu0
    %vm1651 = vcmask 523264
    %v1652 = vsel %vm1651, %v1646, 0.0
    %1653 = vadd.xlane.f32.xlu0 %v1652
    %v1654 = vpop.xlane.xlu0 %1653
    %v1655 = vrcp.pop 64.0
    %v1656 = vmul.f32 %v1654, %v1655
    %v1657 = vsub.f32 %v1646, %v1656
    %v1658 = vmul.f32 %v1657, %v1657
    %v1659 = vsel %vm1651, %v1658, 0.0
    %1660 = vadd.xlane.f32.xlu0 %v1659
    %v1661 = vpop.xlane.xlu0 %1660
    %v1662 = vmul.f32 %v1661, %v1655
    %v1663 = vadd.f32 %v1662, 1e-05
    %v1664 = vrsqrt.pop %v1663
    %v1665 = vmul.f32 %v1657, %v1664
    %v1666 = vlaneseq
    %v1667 = vshrl.u32 %v1666, 7
    %v1668 = vsub.s32 1, %v1667
    %v1669 = vrot.slane %v1541, %v1668
    %v1670 = vmul.f32 %v1665, %v1669
    %v1671 = vlaneseq
    %v1672 = vshrl.u32 %v1671, 7
    %v1673 = vsub.s32 2, %v1672
    %v1674 = vrot.slane %v1541, %v1673
    %v1675 = vadd.f32 %v1670, %v1674
    %v1676 = vmul.f32 %v1675, 0.5
    %v1677 = vmul.f32 %v1675, 0.70710677
    %v1678 = verf.f32.pop %v1677
    %v1679 = vadd.f32 %v1678, 1.0
    %v1680 = vmul.f32 %v1676, %v1679
    %v1681 = vld [vmem:[#allocation13] sm:$0x7]
    %v1682 = vpack.c.bf16 %v1680, %v1680
    %v1683 = vld [vmem:[%s9] sm:$0xf]
    %v1684 = vld [vmem:[%s9 + $0x4] sm:$0xf]
    %v1685 = vld [vmem:[%s9 + $0x8] sm:$0xf]
    %v1686 = vld [vmem:[%s9 + $0xc] sm:$0xf]
    %v1687 = vld [vmem:[%s9 + $0x10] sm:$0xf]
    %v1688 = vld [vmem:[%s9 + $0x14] sm:$0xf]
    %v1689 = vld [vmem:[%s9 + $0x18] sm:$0xf]
    %v1690 = vld [vmem:[%s9 + $0x1c] sm:$0xf]
    %v1691 = vlaneseq
    %v1692 = vshrl.u32 %v1691, 7
    %v1693 = vsub.s32 0, %v1692
    %v1694 = vrot.slane %v1681, %v1693
    %v1703 = vunpack.c.l.b16 %v1683
    %v1704 = vunpack.c.l.b16 %v1684
    %v1705 = vunpack.c.l.b16 %v1685
    %v1706 = vunpack.c.l.b16 %v1686
    %v1707 = vunpack.c.l.b16 %v1687
    %v1708 = vunpack.c.l.b16 %v1688
    %v1709 = vunpack.c.l.b16 %v1689
    %v1710 = vunpack.c.l.b16 %v1690
    %v1711 = vpack.c.b16 %v1704, %v1703
    %v1712 = vpack.c.b16 %v1706, %v1705
    %v1713 = vpack.c.b16 %v1708, %v1707
    %v1714 = vpack.c.b16 %v1710, %v1709
    %v1720 = vsel %vm1651, %v1682, 0
    %1722 = vmatprep.subr.bf16.mxu0 0
    %1723 = vmatpush1.bf16.msra.mxu0 0
    %1724 = vmatprep.subr.bf16.mxu0 0
    %1725 = vmatpush1.bf16.msra.mxu0 0
    %1726 = vmatprep.subr.bf16.mxu0 0
    %1727 = vmatpush1.bf16.msra.mxu0 0
    %1728 = vmatprep.subr.bf16.mxu0 0
    %1729 = vmatpush1.bf16.msra.mxu0 0
    %1730 = vmatprep.subr.bf16.mxu0 0
    %1731 = vmatpush1.bf16.msra.mxu0 %v1714
    %1732 = vmatprep.subr.bf16.mxu0 0
    %1733 = vmatpush1.bf16.msra.mxu0 %v1713
    %1734 = vmatprep.subr.bf16.mxu0 0
    %1735 = vmatpush1.bf16.msra.mxu0 %v1712
    %1736 = vmatprep.subr.bf16.mxu0 0
    %1737 = vmatpush1.bf16.msra.mxu0 %v1711
    %1738 = vmatprep.subr.bf16.mxu0 0
    %1739 = vmatpush2.bf16.msra.mxu0 0
    %1740 = vmatprep.subr.bf16.mxu0 0
    %1741 = vmatpush2.bf16.msra.mxu0 0
    %1742 = vmatprep.subr.bf16.mxu0 0
    %1743 = vmatpush2.bf16.msra.mxu0 0
    %1744 = vmatprep.subr.bf16.mxu0 0
    %1745 = vmatpush2.bf16.msra.mxu0 0
    %1746 = vmatprep.subr.bf16.mxu0 0
    %1747 = vmatpush2.bf16.msra.mxu0 0
    %1748 = vmatprep.subr.bf16.mxu0 0
    %1749 = vmatpush2.bf16.msra.mxu0 0
    %1750 = vmatprep.subr.bf16.mxu0 0
    %1751 = vmatpush2.bf16.msra.mxu0 0
    %1752 = vmatprep.subr.bf16.mxu0 0
    %1753 = vmatpush2.bf16.msra.mxu0 0
    %1754 = vmatprep.mubr.bf16.mxu0 0
    %1755 = vmatmul.mubr.bf16.gmra.mxu0 %v1720
    %v1756 = vpop.f32.mrf.mxu0
    %v1757 = vadd.f32 %v1694, %v1756
    %v1758 = vpop.f32.mrf.mxu0
    %v1759 = vpop.f32.mrf.mxu0
    %v1760 = vpop.f32.mrf.mxu0
    %1761 = vdwg.mxu0
    %vm1762 = vcmask 261120
    %v1763 = vsel %vm1762, %v1757, 0.0
    %1764 = vadd.xlane.f32.xlu0 %v1763
    %v1765 = vpop.xlane.xlu0 %1764
    %v1766 = vrcp.pop 32.0
    %v1767 = vmul.f32 %v1765, %v1766
    %v1768 = vsub.f32 %v1757, %v1767
    %v1769 = vmul.f32 %v1768, %v1768
    %v1770 = vsel %vm1762, %v1769, 0.0
    %1771 = vadd.xlane.f32.xlu0 %v1770
    %v1772 = vpop.xlane.xlu0 %1771
    %v1773 = vmul.f32 %v1772, %v1766
    %v1774 = vadd.f32 %v1773, 1e-05
    %v1775 = vrsqrt.pop %v1774
    %v1776 = vmul.f32 %v1768, %v1775
    %v1777 = vlaneseq
    %v1778 = vshrl.u32 %v1777, 7
    %v1779 = vsub.s32 1, %v1778
    %v1780 = vrot.slane %v1681, %v1779
    %v1781 = vmul.f32 %v1776, %v1780
    %v1782 = vlaneseq
    %v1783 = vshrl.u32 %v1782, 7
    %v1784 = vsub.s32 2, %v1783
    %v1785 = vrot.slane %v1681, %v1784
    %v1786 = vadd.f32 %v1781, %v1785
    %v1787 = vmul.f32 %v1786, 0.5
    %v1788 = vmul.f32 %v1786, 0.70710677
    %v1789 = verf.f32.pop %v1788
    %v1790 = vadd.f32 %v1789, 1.0
    %v1791 = vmul.f32 %v1787, %v1790
    %v1792 = vpack.c.bf16 %v1791, %v1791
    %v1793 = vld [vmem:[#allocation14] sm:$0xf]
    %v1794 = vld [vmem:[#allocation14 + $0x4] sm:$0xf]
    %v1795 = vld [vmem:[#allocation14 + $0x8] sm:$0xf]
    %v1796 = vld [vmem:[#allocation14 + $0xc] sm:$0xf]
    %v1797 = vld [vmem:[%s12] sm:$0x1]
    %v1799 = vlaneseq
    %v1800 = vshrl.u32 %v1799, 7
    %v1801 = vsub.s32 0, %v1800
    %v1802 = vrot.slane %v1797, %v1801
    %v1808 = vunpack.c.l.b16 %v1793
    %v1809 = vunpack.c.l.b16 %v1794
    %v1810 = vunpack.c.l.b16 %v1795
    %v1811 = vunpack.c.l.b16 %v1796
    %v1812 = vpack.c.b16 %v1809, %v1808
    %v1813 = vpack.c.b16 %v1811, %v1810
    %v1817 = vsel %vm1762, %v1792, 0
    %1819 = vmatprep.subr.bf16.mxu0 0
    %1820 = vmatpush1.bf16.msra.mxu0 0
    %1821 = vmatprep.subr.bf16.mxu0 0
    %1822 = vmatpush1.bf16.msra.mxu0 0
    %1823 = vmatprep.subr.bf16.mxu0 0
    %1824 = vmatpush1.bf16.msra.mxu0 0
    %1825 = vmatprep.subr.bf16.mxu0 0
    %1826 = vmatpush1.bf16.msra.mxu0 0
    %1827 = vmatprep.subr.bf16.mxu0 0
    %1828 = vmatpush1.bf16.msra.mxu0 0
    %1829 = vmatprep.subr.bf16.mxu0 0
    %1830 = vmatpush1.bf16.msra.mxu0 0
    %1831 = vmatprep.subr.bf16.mxu0 0
    %1832 = vmatpush1.bf16.msra.mxu0 %v1813
    %1833 = vmatprep.subr.bf16.mxu0 0
    %1834 = vmatpush1.bf16.msra.mxu0 %v1812
    %1835 = vmatprep.subr.bf16.mxu0 0
    %1836 = vmatpush2.bf16.msra.mxu0 0
    %1837 = vmatprep.subr.bf16.mxu0 0
    %1838 = vmatpush2.bf16.msra.mxu0 0
    %1839 = vmatprep.subr.bf16.mxu0 0
    %1840 = vmatpush2.bf16.msra.mxu0 0
    %1841 = vmatprep.subr.bf16.mxu0 0
    %1842 = vmatpush2.bf16.msra.mxu0 0
    %1843 = vmatprep.subr.bf16.mxu0 0
    %1844 = vmatpush2.bf16.msra.mxu0 0
    %1845 = vmatprep.subr.bf16.mxu0 0
    %1846 = vmatpush2.bf16.msra.mxu0 0
    %1847 = vmatprep.subr.bf16.mxu0 0
    %1848 = vmatpush2.bf16.msra.mxu0 0
    %1849 = vmatprep.subr.bf16.mxu0 0
    %1850 = vmatpush2.bf16.msra.mxu0 0
    %1851 = vmatprep.mubr.bf16.mxu0 0
    %1852 = vmatmul.mubr.bf16.gmra.mxu0 %v1817
    %v1853 = vpop.f32.mrf.mxu0
    %v1854 = vadd.f32 %v1802, %v1853
    %v1855 = vpop.f32.mrf.mxu0
    %v1856 = vpop.f32.mrf.mxu0
    %v1857 = vpop.f32.mrf.mxu0
    %1858 = vdwg.mxu0
    %1859 = vst [vmem:[#allocation16] sm:$0xff] %v1854
    // Predicated region
    $region86: #{category_head_forward.1} parent=1 // pred_check
      _
    $region87: #{category_head_forward.1} parent=1 // pred_check_branch
      %1861 = sbr.rel (0) target = $region89
    $region88: #{category_head_forward.1} parent=1 // pred_region
      %s1863 = ssub.s32 128, 128
      %1864 = vsyncadd [#allocation4], %s1863
      %s1866 = sshll.u32 [#allocation16], 4
      %s1867 = int_to_ptr.vmem [resolvable:$true] %s1866
      %1869 = dma.vmem_to_hbm [thread:$0]  %s1867, 128, %s13, [#allocation4]
    $region89: #{category_head_forward.1} parent=1 // pred_fallthru
      _
    // Predicated region
    $region90: #{category_head_forward.1} parent=1 // pred_check
      _
    $region91: #{category_head_forward.1} parent=1 // pred_check_branch
      %1871 = sbr.rel (0) target = $region93
    $region92: #{category_head_forward.1} parent=1 // pred_region
      %1872 = dma.done [#allocation4], 128
    $region93: #{category_head_forward.1} parent=1 // pred_fallthru
      _
    %1873 = vsyncpa [#allocation3], 1
    %1874 = vsyncpa [#allocation6], 1
    %1875 = vsyncpa [#allocation9], 1
    %1876 = vsyncpa [#allocation12], 1
    %1877 = vsyncpa [#allocation15], 1
    %1878 = vsyncpa [#allocation4], 1

</llo_original>
